<compile_context>
chip_gen: v7x
topology: tpu7x:2x2x1
jax: 0.10.0
libtpu: 0.0.40
codegen_flags: <defaults>
</compile_context>

<pallas_src>
import functools
import math

import jax
import jax.numpy as jnp
from jax.experimental import pallas as pl
from jax.experimental.pallas import tpu as pltpu

MXU_DTYPE = jnp.bfloat16  # MXU operand dtype (accumulation stays f32)


# ------------------------------ small helpers ------------------------------

def _round_up(x, m):
    return (x + m - 1) // m * m


def _fit(dim, target):
    """Return (padded_dim, tile). If dim <= target use one full-dim block."""
    if dim <= target:
        return dim, dim
    return _round_up(dim, target), target


def _pad2(x, d0, d1):
    p0, p1 = d0 - x.shape[0], d1 - x.shape[1]
    if p0 == 0 and p1 == 0:
        return x
    return jnp.pad(x, ((0, p0), (0, p1)))


# ----------------------------- tiled linear ---------------------------------

def _linear_kernel(x_ref, w_ref, b_ref, o_ref, acc_ref, *, relu):
    @pl.when(pl.program_id(2) == 0)
    def _():
        acc_ref[...] = jnp.zeros_like(acc_ref)

    acc_ref[...] += jnp.dot(x_ref[...].astype(MXU_DTYPE),
                            w_ref[...].astype(MXU_DTYPE),
                            preferred_element_type=jnp.float32)

    @pl.when(pl.program_id(2) == pl.num_programs(2) - 1)
    def _():
        y = acc_ref[...] + b_ref[...]
        if relu:
            y = jnp.maximum(y, 0.0)
        o_ref[...] = y.astype(o_ref.dtype)


def linear(x, w, b, relu=False, tm=256, tn=256, tk=512):
    """x:(M,K) @ w:(K,N) + b:(N,) -> (M,N); tiled, pipelined, megacore-parallel."""
    M, K = x.shape
    N = w.shape[1]
    Mp, tm = _fit(M, tm)
    Kp, tk = _fit(K, tk)
    Np, tn = _fit(N, tn)
    xp = _pad2(x, Mp, Kp)
    wp = _pad2(w, Kp, Np)
    bp = _pad2(b.reshape(1, N), 1, Np)
    grid = (Mp // tm, Np // tn, Kp // tk)

    out = pl.pallas_call(
        functools.partial(_linear_kernel, relu=relu),
        out_shape=jax.ShapeDtypeStruct((Mp, Np), x.dtype),
        grid=grid,
        in_specs=[
            pl.BlockSpec((tm, tk), lambda i, j, k: (i, k)),
            pl.BlockSpec((tk, tn), lambda i, j, k: (k, j)),
            pl.BlockSpec((1, tn), lambda i, j, k: (0, j)),
        ],
        out_specs=pl.BlockSpec((tm, tn), lambda i, j, k: (i, j)),
        scratch_shapes=[pltpu.VMEM((tm, tn), jnp.float32)],
        compiler_params=pltpu.CompilerParams(
            dimension_semantics=("parallel", "parallel", "arbitrary")),
        cost_estimate=pl.CostEstimate(
            flops=2 * Mp * Kp * Np, transcendentals=0,
            bytes_accessed=(Mp * Kp + Kp * Np + Mp * Np) * 4),
    )(xp, wp, bp)

    if Mp != M or Np != N:
        out = out[:M, :N]
    return out


# -------------- fused out-projection + residual-add + LayerNorm --------------

def _proj_add_ln_kernel(a_ref, w_ref, b_ref, r_ref, g_ref, bt_ref, o_ref):
    y = jnp.dot(a_ref[...].astype(MXU_DTYPE), w_ref[...].astype(MXU_DTYPE),
                preferred_element_type=jnp.float32)
    y = y + b_ref[...] + r_ref[...].astype(jnp.float32)   # bias + residual
    mean = jnp.mean(y, axis=-1, keepdims=True)
    yc = y - mean
    var = jnp.mean(yc * yc, axis=-1, keepdims=True)
    z = yc * jax.lax.rsqrt(var + 1e-5)
    o_ref[...] = (z * g_ref[...] + bt_ref[...]).astype(o_ref.dtype)


def proj_add_layer_norm(a, w, b, resid, g, bt, tm=512):
    """LayerNorm(resid + a @ w + b); a,resid:(M,H), w:(H,H)."""
    M, H = a.shape
    Mp, tm = _fit(M, tm)
    ap, rp = _pad2(a, Mp, H), _pad2(resid, Mp, H)
    out = pl.pallas_call(
        _proj_add_ln_kernel,
        out_shape=jax.ShapeDtypeStruct((Mp, H), a.dtype),
        grid=(Mp // tm,),
        in_specs=[
            pl.BlockSpec((tm, H), lambda i: (i, 0)),
            pl.BlockSpec((H, H), lambda i: (0, 0)),
            pl.BlockSpec((1, H), lambda i: (0, 0)),
            pl.BlockSpec((tm, H), lambda i: (i, 0)),
            pl.BlockSpec((1, H), lambda i: (0, 0)),
            pl.BlockSpec((1, H), lambda i: (0, 0)),
        ],
        out_specs=pl.BlockSpec((tm, H), lambda i: (i, 0)),
        compiler_params=pltpu.CompilerParams(dimension_semantics=("parallel",)),
        cost_estimate=pl.CostEstimate(
            flops=2 * Mp * H * H, transcendentals=0,
            bytes_accessed=(3 * Mp * H + H * H) * 4),
    )(ap, w, b.reshape(1, H), rp, g.reshape(1, H), bt.reshape(1, H))
    return out[:M] if Mp != M else out


# ------------------- fused FFN (+ residual + LayerNorm) ----------------------

def _ffn_ln_kernel(x_ref, w1_ref, b1_ref, w2_ref, b2_ref, g_ref, bt_ref, o_ref):
    x = x_ref[...].astype(jnp.float32)
    h = jnp.dot(x.astype(MXU_DTYPE), w1_ref[...].astype(MXU_DTYPE),
                preferred_element_type=jnp.float32) + b1_ref[...]
    h = jnp.maximum(h, 0.0)
    y = jnp.dot(h.astype(MXU_DTYPE), w2_ref[...].astype(MXU_DTYPE),
                preferred_element_type=jnp.float32) + b2_ref[...]
    y = x + y                                   # residual
    mean = jnp.mean(y, axis=-1, keepdims=True)
    yc = y - mean
    var = jnp.mean(yc * yc, axis=-1, keepdims=True)
    z = yc * jax.lax.rsqrt(var + 1e-5)
    o_ref[...] = (z * g_ref[...] + bt_ref[...]).astype(o_ref.dtype)


def ffn_add_layer_norm(x, w1, b1, w2, b2, g, bt, tm=256):
    """LayerNorm(x + ReLU(x@w1+b1)@w2+b2); intermediate stays in VMEM."""
    M, H = x.shape
    F = w1.shape[1]
    Mp, tm = _fit(M, tm)
    xp = _pad2(x, Mp, H)
    out = pl.pallas_call(
        _ffn_ln_kernel,
        out_shape=jax.ShapeDtypeStruct((Mp, H), x.dtype),
        grid=(Mp // tm,),
        in_specs=[
            pl.BlockSpec((tm, H), lambda i: (i, 0)),
            pl.BlockSpec((H, F), lambda i: (0, 0)),
            pl.BlockSpec((1, F), lambda i: (0, 0)),
            pl.BlockSpec((F, H), lambda i: (0, 0)),
            pl.BlockSpec((1, H), lambda i: (0, 0)),
            pl.BlockSpec((1, H), lambda i: (0, 0)),
            pl.BlockSpec((1, H), lambda i: (0, 0)),
        ],
        out_specs=pl.BlockSpec((tm, H), lambda i: (i, 0)),
        compiler_params=pltpu.CompilerParams(dimension_semantics=("parallel",)),
        cost_estimate=pl.CostEstimate(
            flops=4 * Mp * H * F, transcendentals=0,
            bytes_accessed=(2 * Mp * H + 2 * H * F) * 4),
    )(xp, w1, b1.reshape(1, F), w2, b2.reshape(1, H),
      g.reshape(1, H), bt.reshape(1, H))
    return out[:M] if Mp != M else out


# ----------------------- lane-dense multi-head attention ---------------------

def _mha_kernel(q_ref, k_ref, v_ref, bias_ref, pad_ref, o_ref, *, n_head, scale):
    H = q_ref.shape[2]
    dh = H // n_head
    q = q_ref[0]                        # (T, H)  lane-dense
    k = k_ref[0]                        # (S, H)
    v = v_ref[0]                        # (S, H)
    bias = bias_ref[...] + pad_ref[0]   # (T,S) + (1,S) -> additive mask built in-kernel

    outs = []
    for h in range(n_head):             # static unrolled head loop on the VMEM tile
        lo = h * dh
        qh = q[:, lo:lo + dh].astype(MXU_DTYPE)
        kh = k[:, lo:lo + dh].astype(MXU_DTYPE)
        vh = v[:, lo:lo + dh].astype(MXU_DTYPE)
        s = jax.lax.dot_general(qh, kh, (((1,), (1,)), ((), ())),
                                preferred_element_type=jnp.float32) * scale + bias
        s = s - jnp.max(s, axis=-1, keepdims=True)
        p = jnp.exp(s)
        denom = jnp.sum(p, axis=-1, keepdims=True)
        p = p * pl.reciprocal(denom, approx=True)      # EUP, not VALU divide
        outs.append(jnp.dot(p.astype(MXU_DTYPE), vh,
                            preferred_element_type=jnp.float32))
    o_ref[...] = jnp.concatenate(outs, axis=-1)[None].astype(o_ref.dtype)


def attention(q, k, v, bias_ts, kv_pad_add, n_head):
    """q:(B,T,H), k/v:(B,S,H); bias_ts:(T,S) additive; kv_pad_add:(B,S) additive."""
    B, T, H = q.shape
    S = k.shape[1]
    dh = H // n_head
    scale = 1.0 / math.sqrt(dh)
    pad3 = kv_pad_add.reshape(B, 1, S)
    return pl.pallas_call(
        functools.partial(_mha_kernel, n_head=n_head, scale=scale),
        out_shape=jax.ShapeDtypeStruct((B, T, H), q.dtype),
        grid=(B,),
        in_specs=[
            pl.BlockSpec((1, T, H), lambda b: (b, 0, 0)),
            pl.BlockSpec((1, S, H), lambda b: (b, 0, 0)),
            pl.BlockSpec((1, S, H), lambda b: (b, 0, 0)),
            pl.BlockSpec((T, S), lambda b: (0, 0)),
            pl.BlockSpec((1, 1, S), lambda b: (b, 0, 0)),
        ],
        out_specs=pl.BlockSpec((1, T, H), lambda b: (b, 0, 0)),
        compiler_params=pltpu.CompilerParams(dimension_semantics=("parallel",)),
    )(q, k, v, bias_ts, pad3)


# --------------------------- model (glue + kernels) ---------------------------

def decoder_layer(x, memory, p, bias_self, bias_cross, pad_trg_add, pad_src_add,
                  n_head):
    B, T, H = x.shape
    S = memory.shape[1]
    x2d = x.reshape(B * T, H)

    # --- self-attention block (fused QKV projection, fused out-proj+res+LN) ---
    sa = p["self_attn"]
    qkv = linear(x2d, sa["w_qkv"], sa["b_qkv"]).reshape(B, T, 3 * H)
    q, k, v = qkv[..., :H], qkv[..., H:2 * H], qkv[..., 2 * H:]
    a = attention(q, k, v, bias_self, pad_trg_add, n_head)
    x2d = proj_add_layer_norm(a.reshape(B * T, H), sa["wo"], sa["bo"],
                              x2d, p["ln1_g"], p["ln1_b"])

    # --- cross-attention block (fused KV projection of memory) ---
    ca = p["cross_attn"]
    q = linear(x2d, ca["wq"], ca["bq"]).reshape(B, T, H)
    kv = linear(memory.reshape(B * S, H), ca["w_kv"], ca["b_kv"]).reshape(B, S, 2 * H)
    k, v = kv[..., :H], kv[..., H:]
    a = attention(q, k, v, bias_cross, pad_src_add, n_head)
    x2d = proj_add_layer_norm(a.reshape(B * T, H), ca["wo"], ca["bo"],
                              x2d, p["ln2_g"], p["ln2_b"])

    # --- fully fused feed-forward + residual + LayerNorm ---
    x2d = ffn_add_layer_norm(x2d, p["w1"], p["b1"], p["w2"], p["b2"],
                             p["ln3_g"], p["ln3_b"])
    return x2d.reshape(B, T, H)


def decoder_forward(params, trg, memory, mask_trg, mask_pad_trg, mask_pad_src,
                    *, n_head):
    B, T = trg.shape
    S = memory.shape[1]
    H = params["emb_token"].shape[1]
    if T > params["emb_position"].shape[0]:
        raise ValueError("sequence length exceeds positional-embedding max_len")
    scale = math.sqrt(H)

    # embeddings (gather is glue, kept in plain JAX)
    tok = jnp.take(params["emb_token"], trg, axis=0)                      # (B,T,H)
    pos = jnp.take(params["emb_position"], jnp.arange(T), axis=0)[None]   # (1,T,H)
    x = tok * scale + pos

    # small additive masks only (no materialized (B,T,S) float mask)
    neg = jnp.float32(-1e9)
    bias_self = jnp.where(mask_trg, neg, 0.0).astype(jnp.float32)          # (T,T)
    bias_cross = jnp.zeros((T, S), jnp.float32)                            # (T,S)
    pad_trg_add = jnp.where(mask_pad_trg, neg, 0.0).astype(jnp.float32)    # (B,T)
    pad_src_add = jnp.where(mask_pad_src, neg, 0.0).astype(jnp.float32)    # (B,S)

    for lp in params["layers"]:
        x = decoder_layer(x, memory, lp, bias_self, bias_cross,
                          pad_trg_add, pad_src_add, n_head)

    out = linear(x.reshape(B * T, H), params["w_fc"], params["b_fc"])
    return out.reshape(B, T, -1)


# ------------------------------ parameter init ------------------------------

def init_params(key, size_hid, size_out, n_layer, n_head, size_ff, max_len=128):
    cnt = [0]

    def nk():
        cnt[0] += 1
        return jax.random.fold_in(key, cnt[0])

    def w(shape, s=0.02):
        return s * jax.random.normal(nk(), shape, dtype=jnp.float32)

    def zeros(n):
        return jnp.zeros((n,), jnp.float32)

    def ones(n):
        return jnp.ones((n,), jnp.float32)

    def attn_self():
        return {"w_qkv": w((size_hid, 3 * size_hid)), "b_qkv": zeros(3 * size_hid),
                "wo": w((size_hid, size_hid)), "bo": zeros(size_hid)}

    def attn_cross():
        return {"wq": w((size_hid, size_hid)), "bq": zeros(size_hid),
                "w_kv": w((size_hid, 2 * size_hid)), "b_kv": zeros(2 * size_hid),
                "wo": w((size_hid, size_hid)), "bo": zeros(size_hid)}

    layers = []
    for _ in range(n_layer):
        layers.append({
            "self_attn": attn_self(),
            "cross_attn": attn_cross(),
            "w1": w((size_hid, size_ff)), "b1": zeros(size_ff),
            "w2": w((size_ff, size_hid)), "b2": zeros(size_hid),
            "ln1_g": ones(size_hid), "ln1_b": zeros(size_hid),
            "ln2_g": ones(size_hid), "ln2_b": zeros(size_hid),
            "ln3_g": ones(size_hid), "ln3_b": zeros(size_hid),
        })

    return {
        "emb_token": jax.random.normal(nk(), (size_out, size_hid), dtype=jnp.float32),
        "emb_position": jax.random.normal(nk(), (max_len, size_hid), dtype=jnp.float32),
        "layers": layers,
        "w_fc": w((size_hid, size_out)),
        "b_fc": zeros(size_out),
    }


# ----------------------------------- main -----------------------------------

if __name__ == "__main__":
    size_hid, size_out, n_layer, n_head, size_ff = 32, 16, 2, 4, 64
    B, T, S = 2, 8, 8

    key = jax.random.PRNGKey(0)
    k_p, k_trg, k_mem = jax.random.split(key, 3)

    params = init_params(k_p, size_hid, size_out, n_layer, n_head, size_ff)

    trg = jax.random.randint(k_trg, (B, T), 0, size_out, dtype=jnp.int32)
    memory = jax.random.normal(k_mem, (B, S, size_hid), dtype=jnp.float32)

    # causal mask for the target (True above diagonal = not allowed)
    mask_trg = jnp.triu(jnp.ones((T, T), dtype=bool), k=1)
    # padding masks (True = pad token, ignored as attention key)
    mask_pad_trg = jnp.zeros((B, T), dtype=bool).at[1, T - 1].set(True)
    mask_pad_src = jnp.zeros((B, S), dtype=bool).at[0, S - 2:].set(True)

    fwd = jax.jit(functools.partial(decoder_forward, n_head=n_head))
    out = fwd(params, trg, memory, mask_trg, mask_pad_trg, mask_pad_src)
    out = jax.block_until_ready(out)

    assert out.shape == (B, T, size_out), out.shape
    assert bool(jnp.all(jnp.isfinite(out)))
    print("KERNEL_OK")
</pallas_src>

<mosaic_0001>
module attributes {stable_mosaic.version = 11 : i64} {
  func.func @_linear_kernel(%arg0: i32, %arg1: i32, %arg2: i32, %arg3: memref<16x32xf32, #tpu.memory_space<vmem>>, %arg4: memref<32x96xf32, #tpu.memory_space<vmem>>, %arg5: memref<1x96xf32, #tpu.memory_space<vmem>>, %arg6: memref<16x96xf32, #tpu.memory_space<vmem>>, %arg7: memref<16x96xf32, #tpu.memory_space<vmem>>) attributes {dimension_semantics = [#tpu.dimension_semantics<parallel>, #tpu.dimension_semantics<parallel>, #tpu.dimension_semantics<arbitrary>], iteration_bounds = array<i64: 1, 1, 1>, scalar_prefetch = 0 : i64, scratch_operands = 1 : i64, tpu.core_type = #tpu.core_type<tc>, window_params = [{transform_indices = @transform_0, window_bounds = array<i64: 16, 32>}, {transform_indices = @transform_1, window_bounds = array<i64: 32, 96>}, {transform_indices = @transform_2, window_bounds = array<i64: 1, 96>}, {transform_indices = @transform_3, window_bounds = array<i64: 16, 96>}]} {
    %c0_i32 = arith.constant 0 : i32
    %0 = arith.cmpi eq, %arg2, %c0_i32 : i32
    %1 = arith.extui %0 : i1 to i32
    %c0_i32_0 = arith.constant 0 : i32
    %2 = arith.cmpi ne, %1, %c0_i32_0 : i32
    scf.if %2 {
      %cst_10 = arith.constant 0.000000e+00 : f32
      %14 = vector.broadcast %cst_10 : f32 to vector<16x96xf32>
      %c0_11 = arith.constant 0 : index
      %c0_12 = arith.constant 0 : index
      %15 = vector.load %arg7[%c0_11, %c0_12] : memref<16x96xf32, #tpu.memory_space<vmem>>, vector<16x96xf32>
      tpu.vector_store %arg7[%c0_11, %c0_12], %14 {strides = array<i32>} : memref<16x96xf32, #tpu.memory_space<vmem>>, vector<16x96xf32>,
    } else {
    }
    %c0 = arith.constant 0 : index
    %c0_1 = arith.constant 0 : index
    %3 = vector.load %arg7[%c0, %c0_1] : memref<16x96xf32, #tpu.memory_space<vmem>>, vector<16x96xf32>
    %c0_2 = arith.constant 0 : index
    %c0_3 = arith.constant 0 : index
    %4 = vector.load %arg3[%c0_2, %c0_3] : memref<16x32xf32, #tpu.memory_space<vmem>>, vector<16x32xf32>
    %5 = arith.truncf %4 : vector<16x32xf32> to vector<16x32xbf16>
    %c0_4 = arith.constant 0 : index
    %c0_5 = arith.constant 0 : index
    %6 = vector.load %arg4[%c0_4, %c0_5] : memref<32x96xf32, #tpu.memory_space<vmem>>, vector<32x96xf32>
    %7 = arith.truncf %6 : vector<32x96xf32> to vector<32x96xbf16>
    %cst = arith.constant dense<0.000000e+00> : vector<16x96xf32>
    %8 = tpu.matmul %5, %7, %cst {dimension_numbers = #tpu.dot_dimension_numbers<[1], [0], [0], [1], [0, 0, 1, 1], [], []>} : vector<16x32xbf16>, vector<32x96xbf16>, vector<16x96xf32> -> vector<16x96xf32>
    %9 = arith.addf %3, %8 : vector<16x96xf32>
    %c0_6 = arith.constant 0 : index
    %c0_7 = arith.constant 0 : index
    %10 = vector.load %arg7[%c0_6, %c0_7] : memref<16x96xf32, #tpu.memory_space<vmem>>, vector<16x96xf32>
    tpu.vector_store %arg7[%c0_6, %c0_7], %9 {strides = array<i32>} : memref<16x96xf32, #tpu.memory_space<vmem>>, vector<16x96xf32>,
    %c0_i32_8 = arith.constant 0 : i32
    %11 = arith.cmpi eq, %arg2, %c0_i32_8 : i32
    %12 = arith.extui %11 : i1 to i32
    %c0_i32_9 = arith.constant 0 : i32
    %13 = arith.cmpi ne, %12, %c0_i32_9 : i32
    scf.if %13 {
      %c0_10 = arith.constant 0 : index
      %c0_11 = arith.constant 0 : index
      %14 = vector.load %arg7[%c0_10, %c0_11] : memref<16x96xf32, #tpu.memory_space<vmem>>, vector<16x96xf32>
      %c0_12 = arith.constant 0 : index
      %c0_13 = arith.constant 0 : index
      %15 = vector.load %arg5[%c0_12, %c0_13] : memref<1x96xf32, #tpu.memory_space<vmem>>, vector<1x96xf32>
      %16 = vector.broadcast %15 : vector<1x96xf32> to vector<16x96xf32>
      %17 = arith.addf %14, %16 : vector<16x96xf32>
      %c0_14 = arith.constant 0 : index
      %c0_15 = arith.constant 0 : index
      %18 = vector.load %arg6[%c0_14, %c0_15] : memref<16x96xf32, #tpu.memory_space<vmem>>, vector<16x96xf32>
      tpu.vector_store %arg6[%c0_14, %c0_15], %17 {strides = array<i32>} : memref<16x96xf32, #tpu.memory_space<vmem>>, vector<16x96xf32>,
    } else {
    }
    return
  }
  func.func @transform_0(%arg0: i32, %arg1: i32, %arg2: i32) -> (i32, i32) {
    %c0_i32 = arith.constant 0 : i32
    return %arg0, %arg2 : i32, i32
  }
  func.func @transform_1(%arg0: i32, %arg1: i32, %arg2: i32) -> (i32, i32) {
    %c0_i32 = arith.constant 0 : i32
    return %arg2, %arg1 : i32, i32
  }
  func.func @transform_2(%arg0: i32, %arg1: i32, %arg2: i32) -> (i32, i32) {
    %c0_i32 = arith.constant 0 : i32
    %c0_i32_0 = arith.constant 0 : i32
    return %c0_i32, %arg1 : i32, i32
  }
  func.func @transform_3(%arg0: i32, %arg1: i32, %arg2: i32) -> (i32, i32) {
    %c0_i32 = arith.constant 0 : i32
    return %arg0, %arg1 : i32, i32
  }
}

module attributes {stable_mosaic.version = 11 : i64} {
  func.func @_mha_kernel(%arg0: i32, %arg1: memref<1x8x32xf32, #tpu.memory_space<vmem>>, %arg2: memref<1x8x32xf32, #tpu.memory_space<vmem>>, %arg3: memref<1x8x32xf32, #tpu.memory_space<vmem>>, %arg4: memref<8x8xf32, #tpu.memory_space<vmem>>, %arg5: memref<1x1x8xf32, #tpu.memory_space<vmem>>, %arg6: memref<1x8x32xf32, #tpu.memory_space<vmem>>) attributes {dimension_semantics = [#tpu.dimension_semantics<parallel>], iteration_bounds = array<i64: 2>, scalar_prefetch = 0 : i64, scratch_operands = 0 : i64, tpu.core_type = #tpu.core_type<tc>, window_params = [{transform_indices = @transform_0, window_bounds = array<i64: 1, 8, 32>}, {transform_indices = @transform_1, window_bounds = array<i64: 1, 8, 32>}, {transform_indices = @transform_2, window_bounds = array<i64: 1, 8, 32>}, {pipeline_mode = #tpu.pipeline_mode<synchronous>, transform_indices = @transform_3, window_bounds = array<i64: 8, 8>}, {transform_indices = @transform_4, window_bounds = array<i64: 1, 1, 8>}, {transform_indices = @transform_5, window_bounds = array<i64: 1, 8, 32>}]} {
    %c0 = arith.constant 0 : index
    %c0_0 = arith.constant 0 : index
    %c0_1 = arith.constant 0 : index
    %0 = vector.load %arg1[%c0, %c0_0, %c0_1] : memref<1x8x32xf32, #tpu.memory_space<vmem>>, vector<1x8x32xf32>
    %1 = vector.shape_cast %0 : vector<1x8x32xf32> to vector<8x32xf32>
    %c0_2 = arith.constant 0 : index
    %c0_3 = arith.constant 0 : index
    %c0_4 = arith.constant 0 : index
    %2 = vector.load %arg2[%c0_2, %c0_3, %c0_4] : memref<1x8x32xf32, #tpu.memory_space<vmem>>, vector<1x8x32xf32>
    %3 = vector.shape_cast %2 : vector<1x8x32xf32> to vector<8x32xf32>
    %c0_5 = arith.constant 0 : index
    %c0_6 = arith.constant 0 : index
    %c0_7 = arith.constant 0 : index
    %4 = vector.load %arg3[%c0_5, %c0_6, %c0_7] : memref<1x8x32xf32, #tpu.memory_space<vmem>>, vector<1x8x32xf32>
    %5 = vector.shape_cast %4 : vector<1x8x32xf32> to vector<8x32xf32>
    %c0_8 = arith.constant 0 : index
    %c0_9 = arith.constant 0 : index
    %6 = vector.load %arg4[%c0_8, %c0_9] : memref<8x8xf32, #tpu.memory_space<vmem>>, vector<8x8xf32>
    %c0_10 = arith.constant 0 : index
    %c0_11 = arith.constant 0 : index
    %c0_12 = arith.constant 0 : index
    %7 = vector.load %arg5[%c0_10, %c0_11, %c0_12] : memref<1x1x8xf32, #tpu.memory_space<vmem>>, vector<1x1x8xf32>
    %8 = vector.shape_cast %7 : vector<1x1x8xf32> to vector<1x8xf32>
    %9 = vector.broadcast %8 : vector<1x8xf32> to vector<8x8xf32>
    %10 = arith.addf %6, %9 : vector<8x8xf32>
    %11 = vector.extract_strided_slice %1 {offsets = [0, 0], sizes = [8, 8], strides = [1, 1]} : vector<8x32xf32> to vector<8x8xf32>
    %12 = arith.truncf %11 : vector<8x8xf32> to vector<8x8xbf16>
    %13 = vector.extract_strided_slice %3 {offsets = [0, 0], sizes = [8, 8], strides = [1, 1]} : vector<8x32xf32> to vector<8x8xf32>
    %14 = arith.truncf %13 : vector<8x8xf32> to vector<8x8xbf16>
    %15 = vector.extract_strided_slice %5 {offsets = [0, 0], sizes = [8, 8], strides = [1, 1]} : vector<8x32xf32> to vector<8x8xf32>
    %16 = arith.truncf %15 : vector<8x8xf32> to vector<8x8xbf16>
    %cst = arith.constant dense<0.000000e+00> : vector<8x8xf32>
    %17 = tpu.matmul %12, %14, %cst {dimension_numbers = #tpu.dot_dimension_numbers<[1], [1], [0], [0], [0, 0, 1, 0], [], []>} : vector<8x8xbf16>, vector<8x8xbf16>, vector<8x8xf32> -> vector<8x8xf32>
    %cst_13 = arith.constant 0.353553385 : f32
    %18 = vector.broadcast %cst_13 : f32 to vector<8x8xf32>
    %19 = arith.mulf %17, %18 : vector<8x8xf32>
    %20 = arith.addf %19, %10 : vector<8x8xf32>
    %cst_14 = arith.constant dense<0xFF800000> : vector<8xf32>
    %21 = vector.multi_reduction <maximumf>, %20, %cst_14 [1] : vector<8x8xf32> to vector<8xf32>
    %22 = vector.shape_cast %21 : vector<8xf32> to vector<8x1xf32>
    %23 = vector.broadcast %22 : vector<8x1xf32> to vector<8x8xf32>
    %24 = arith.subf %20, %23 : vector<8x8xf32>
    %25 = math.exp %24 : vector<8x8xf32>
    %cst_15 = arith.constant dense<0.000000e+00> : vector<8xf32>
    %26 = vector.multi_reduction <add>, %25, %cst_15 [1] : vector<8x8xf32> to vector<8xf32>
    %27 = vector.shape_cast %26 : vector<8xf32> to vector<8x1xf32>
    %28 = tpu.reciprocal %27 {approx = true} : vector<8x1xf32> -> vector<8x1xf32>
    %29 = vector.broadcast %28 : vector<8x1xf32> to vector<8x8xf32>
    %30 = arith.mulf %25, %29 : vector<8x8xf32>
    %31 = arith.truncf %30 : vector<8x8xf32> to vector<8x8xbf16>
    %cst_16 = arith.constant dense<0.000000e+00> : vector<8x8xf32>
    %32 = tpu.matmul %31, %16, %cst_16 {dimension_numbers = #tpu.dot_dimension_numbers<[1], [0], [0], [1], [0, 0, 1, 1], [], []>} : vector<8x8xbf16>, vector<8x8xbf16>, vector<8x8xf32> -> vector<8x8xf32>
    %33 = vector.extract_strided_slice %1 {offsets = [0, 8], sizes = [8, 8], strides = [1, 1]} : vector<8x32xf32> to vector<8x8xf32>
    %34 = arith.truncf %33 : vector<8x8xf32> to vector<8x8xbf16>
    %35 = vector.extract_strided_slice %3 {offsets = [0, 8], sizes = [8, 8], strides = [1, 1]} : vector<8x32xf32> to vector<8x8xf32>
    %36 = arith.truncf %35 : vector<8x8xf32> to vector<8x8xbf16>
    %37 = vector.extract_strided_slice %5 {offsets = [0, 8], sizes = [8, 8], strides = [1, 1]} : vector<8x32xf32> to vector<8x8xf32>
    %38 = arith.truncf %37 : vector<8x8xf32> to vector<8x8xbf16>
    %cst_17 = arith.constant dense<0.000000e+00> : vector<8x8xf32>
    %39 = tpu.matmul %34, %36, %cst_17 {dimension_numbers = #tpu.dot_dimension_numbers<[1], [1], [0], [0], [0, 0, 1, 0], [], []>} : vector<8x8xbf16>, vector<8x8xbf16>, vector<8x8xf32> -> vector<8x8xf32>
    %cst_18 = arith.constant 0.353553385 : f32
    %40 = vector.broadcast %cst_18 : f32 to vector<8x8xf32>
    %41 = arith.mulf %39, %40 : vector<8x8xf32>
    %42 = arith.addf %41, %10 : vector<8x8xf32>
    %cst_19 = arith.constant dense<0xFF800000> : vector<8xf32>
    %43 = vector.multi_reduction <maximumf>, %42, %cst_19 [1] : vector<8x8xf32> to vector<8xf32>
    %44 = vector.shape_cast %43 : vector<8xf32> to vector<8x1xf32>
    %45 = vector.broadcast %44 : vector<8x1xf32> to vector<8x8xf32>
    %46 = arith.subf %42, %45 : vector<8x8xf32>
    %47 = math.exp %46 : vector<8x8xf32>
    %cst_20 = arith.constant dense<0.000000e+00> : vector<8xf32>
    %48 = vector.multi_reduction <add>, %47, %cst_20 [1] : vector<8x8xf32> to vector<8xf32>
    %49 = vector.shape_cast %48 : vector<8xf32> to vector<8x1xf32>
    %50 = tpu.reciprocal %49 {approx = true} : vector<8x1xf32> -> vector<8x1xf32>
    %51 = vector.broadcast %50 : vector<8x1xf32> to vector<8x8xf32>
    %52 = arith.mulf %47, %51 : vector<8x8xf32>
    %53 = arith.truncf %52 : vector<8x8xf32> to vector<8x8xbf16>
    %cst_21 = arith.constant dense<0.000000e+00> : vector<8x8xf32>
    %54 = tpu.matmul %53, %38, %cst_21 {dimension_numbers = #tpu.dot_dimension_numbers<[1], [0], [0], [1], [0, 0, 1, 1], [], []>} : vector<8x8xbf16>, vector<8x8xbf16>, vector<8x8xf32> -> vector<8x8xf32>
    %55 = vector.extract_strided_slice %1 {offsets = [0, 16], sizes = [8, 8], strides = [1, 1]} : vector<8x32xf32> to vector<8x8xf32>
    %56 = arith.truncf %55 : vector<8x8xf32> to vector<8x8xbf16>
    %57 = vector.extract_strided_slice %3 {offsets = [0, 16], sizes = [8, 8], strides = [1, 1]} : vector<8x32xf32> to vector<8x8xf32>
    %58 = arith.truncf %57 : vector<8x8xf32> to vector<8x8xbf16>
    %59 = vector.extract_strided_slice %5 {offsets = [0, 16], sizes = [8, 8], strides = [1, 1]} : vector<8x32xf32> to vector<8x8xf32>
    %60 = arith.truncf %59 : vector<8x8xf32> to vector<8x8xbf16>
    %cst_22 = arith.constant dense<0.000000e+00> : vector<8x8xf32>
    %61 = tpu.matmul %56, %58, %cst_22 {dimension_numbers = #tpu.dot_dimension_numbers<[1], [1], [0], [0], [0, 0, 1, 0], [], []>} : vector<8x8xbf16>, vector<8x8xbf16>, vector<8x8xf32> -> vector<8x8xf32>
    %cst_23 = arith.constant 0.353553385 : f32
    %62 = vector.broadcast %cst_23 : f32 to vector<8x8xf32>
    %63 = arith.mulf %61, %62 : vector<8x8xf32>
    %64 = arith.addf %63, %10 : vector<8x8xf32>
    %cst_24 = arith.constant dense<0xFF800000> : vector<8xf32>
    %65 = vector.multi_reduction <maximumf>, %64, %cst_24 [1] : vector<8x8xf32> to vector<8xf32>
    %66 = vector.shape_cast %65 : vector<8xf32> to vector<8x1xf32>
    %67 = vector.broadcast %66 : vector<8x1xf32> to vector<8x8xf32>
    %68 = arith.subf %64, %67 : vector<8x8xf32>
    %69 = math.exp %68 : vector<8x8xf32>
    %cst_25 = arith.constant dense<0.000000e+00> : vector<8xf32>
    %70 = vector.multi_reduction <add>, %69, %cst_25 [1] : vector<8x8xf32> to vector<8xf32>
    %71 = vector.shape_cast %70 : vector<8xf32> to vector<8x1xf32>
    %72 = tpu.reciprocal %71 {approx = true} : vector<8x1xf32> -> vector<8x1xf32>
    %73 = vector.broadcast %72 : vector<8x1xf32> to vector<8x8xf32>
    %74 = arith.mulf %69, %73 : vector<8x8xf32>
    %75 = arith.truncf %74 : vector<8x8xf32> to vector<8x8xbf16>
    %cst_26 = arith.constant dense<0.000000e+00> : vector<8x8xf32>
    %76 = tpu.matmul %75, %60, %cst_26 {dimension_numbers = #tpu.dot_dimension_numbers<[1], [0], [0], [1], [0, 0, 1, 1], [], []>} : vector<8x8xbf16>, vector<8x8xbf16>, vector<8x8xf32> -> vector<8x8xf32>
    %77 = vector.extract_strided_slice %1 {offsets = [0, 24], sizes = [8, 8], strides = [1, 1]} : vector<8x32xf32> to vector<8x8xf32>
    %78 = arith.truncf %77 : vector<8x8xf32> to vector<8x8xbf16>
    %79 = vector.extract_strided_slice %3 {offsets = [0, 24], sizes = [8, 8], strides = [1, 1]} : vector<8x32xf32> to vector<8x8xf32>
    %80 = arith.truncf %79 : vector<8x8xf32> to vector<8x8xbf16>
    %81 = vector.extract_strided_slice %5 {offsets = [0, 24], sizes = [8, 8], strides = [1, 1]} : vector<8x32xf32> to vector<8x8xf32>
    %82 = arith.truncf %81 : vector<8x8xf32> to vector<8x8xbf16>
    %cst_27 = arith.constant dense<0.000000e+00> : vector<8x8xf32>
    %83 = tpu.matmul %78, %80, %cst_27 {dimension_numbers = #tpu.dot_dimension_numbers<[1], [1], [0], [0], [0, 0, 1, 0], [], []>} : vector<8x8xbf16>, vector<8x8xbf16>, vector<8x8xf32> -> vector<8x8xf32>
    %cst_28 = arith.constant 0.353553385 : f32
    %84 = vector.broadcast %cst_28 : f32 to vector<8x8xf32>
    %85 = arith.mulf %83, %84 : vector<8x8xf32>
    %86 = arith.addf %85, %10 : vector<8x8xf32>
    %cst_29 = arith.constant dense<0xFF800000> : vector<8xf32>
    %87 = vector.multi_reduction <maximumf>, %86, %cst_29 [1] : vector<8x8xf32> to vector<8xf32>
    %88 = vector.shape_cast %87 : vector<8xf32> to vector<8x1xf32>
    %89 = vector.broadcast %88 : vector<8x1xf32> to vector<8x8xf32>
    %90 = arith.subf %86, %89 : vector<8x8xf32>
    %91 = math.exp %90 : vector<8x8xf32>
    %cst_30 = arith.constant dense<0.000000e+00> : vector<8xf32>
    %92 = vector.multi_reduction <add>, %91, %cst_30 [1] : vector<8x8xf32> to vector<8xf32>
    %93 = vector.shape_cast %92 : vector<8xf32> to vector<8x1xf32>
    %94 = tpu.reciprocal %93 {approx = true} : vector<8x1xf32> -> vector<8x1xf32>
    %95 = vector.broadcast %94 : vector<8x1xf32> to vector<8x8xf32>
    %96 = arith.mulf %91, %95 : vector<8x8xf32>
    %97 = arith.truncf %96 : vector<8x8xf32> to vector<8x8xbf16>
    %cst_31 = arith.constant dense<0.000000e+00> : vector<8x8xf32>
    %98 = tpu.matmul %97, %82, %cst_31 {dimension_numbers = #tpu.dot_dimension_numbers<[1], [0], [0], [1], [0, 0, 1, 1], [], []>} : vector<8x8xbf16>, vector<8x8xbf16>, vector<8x8xf32> -> vector<8x8xf32>
    %99 = tpu.concatenate %32, %54, %76, %98 in 1 : vector<8x8xf32>, vector<8x8xf32>, vector<8x8xf32>, vector<8x8xf32> -> vector<8x32xf32>
    %100 = vector.shape_cast %99 : vector<8x32xf32> to vector<1x8x32xf32>
    %c0_32 = arith.constant 0 : index
    %c0_33 = arith.constant 0 : index
    %c0_34 = arith.constant 0 : index
    %101 = vector.load %arg6[%c0_32, %c0_33, %c0_34] : memref<1x8x32xf32, #tpu.memory_space<vmem>>, vector<1x8x32xf32>
    tpu.vector_store %arg6[%c0_32, %c0_33, %c0_34], %100 {strides = array<i32>} : memref<1x8x32xf32, #tpu.memory_space<vmem>>, vector<1x8x32xf32>,
    return
  }
  func.func @transform_0(%arg0: i32) -> (i32, i32, i32) {
    %c0_i32 = arith.constant 0 : i32
    %c0_i32_0 = arith.constant 0 : i32
    %c0_i32_1 = arith.constant 0 : i32
    return %arg0, %c0_i32, %c0_i32_0 : i32, i32, i32
  }
  func.func @transform_1(%arg0: i32) -> (i32, i32, i32) {
    %c0_i32 = arith.constant 0 : i32
    %c0_i32_0 = arith.constant 0 : i32
    %c0_i32_1 = arith.constant 0 : i32
    return %arg0, %c0_i32, %c0_i32_0 : i32, i32, i32
  }
  func.func @transform_2(%arg0: i32) -> (i32, i32, i32) {
    %c0_i32 = arith.constant 0 : i32
    %c0_i32_0 = arith.constant 0 : i32
    %c0_i32_1 = arith.constant 0 : i32
    return %arg0, %c0_i32, %c0_i32_0 : i32, i32, i32
  }
  func.func @transform_3(%arg0: i32) -> (i32, i32) {
    %c0_i32 = arith.constant 0 : i32
    %c0_i32_0 = arith.constant 0 : i32
    %c0_i32_1 = arith.constant 0 : i32
    return %c0_i32, %c0_i32_0 : i32, i32
  }
  func.func @transform_4(%arg0: i32) -> (i32, i32, i32) {
    %c0_i32 = arith.constant 0 : i32
    %c0_i32_0 = arith.constant 0 : i32
    %c0_i32_1 = arith.constant 0 : i32
    return %arg0, %c0_i32, %c0_i32_0 : i32, i32, i32
  }
  func.func @transform_5(%arg0: i32) -> (i32, i32, i32) {
    %c0_i32 = arith.constant 0 : i32
    %c0_i32_0 = arith.constant 0 : i32
    %c0_i32_1 = arith.constant 0 : i32
    return %arg0, %c0_i32, %c0_i32_0 : i32, i32, i32
  }
}

module attributes {stable_mosaic.version = 11 : i64} {
  func.func @_linear_kernel(%arg0: i32, %arg1: i32, %arg2: i32, %arg3: memref<16x32xf32, #tpu.memory_space<vmem>>, %arg4: memref<32x32xf32, #tpu.memory_space<vmem>>, %arg5: memref<1x32xf32, #tpu.memory_space<vmem>>, %arg6: memref<16x32xf32, #tpu.memory_space<vmem>>, %arg7: memref<16x32xf32, #tpu.memory_space<vmem>>) attributes {dimension_semantics = [#tpu.dimension_semantics<parallel>, #tpu.dimension_semantics<parallel>, #tpu.dimension_semantics<arbitrary>], iteration_bounds = array<i64: 1, 1, 1>, scalar_prefetch = 0 : i64, scratch_operands = 1 : i64, tpu.core_type = #tpu.core_type<tc>, window_params = [{transform_indices = @transform_0, window_bounds = array<i64: 16, 32>}, {transform_indices = @transform_1, window_bounds = array<i64: 32, 32>}, {transform_indices = @transform_2, window_bounds = array<i64: 1, 32>}, {transform_indices = @transform_3, window_bounds = array<i64: 16, 32>}]} {
    %c0_i32 = arith.constant 0 : i32
    %0 = arith.cmpi eq, %arg2, %c0_i32 : i32
    %1 = arith.extui %0 : i1 to i32
    %c0_i32_0 = arith.constant 0 : i32
    %2 = arith.cmpi ne, %1, %c0_i32_0 : i32
    scf.if %2 {
      %cst_10 = arith.constant 0.000000e+00 : f32
      %14 = vector.broadcast %cst_10 : f32 to vector<16x32xf32>
      %c0_11 = arith.constant 0 : index
      %c0_12 = arith.constant 0 : index
      %15 = vector.load %arg7[%c0_11, %c0_12] : memref<16x32xf32, #tpu.memory_space<vmem>>, vector<16x32xf32>
      tpu.vector_store %arg7[%c0_11, %c0_12], %14 {strides = array<i32>} : memref<16x32xf32, #tpu.memory_space<vmem>>, vector<16x32xf32>,
    } else {
    }
    %c0 = arith.constant 0 : index
    %c0_1 = arith.constant 0 : index
    %3 = vector.load %arg7[%c0, %c0_1] : memref<16x32xf32, #tpu.memory_space<vmem>>, vector<16x32xf32>
    %c0_2 = arith.constant 0 : index
    %c0_3 = arith.constant 0 : index
    %4 = vector.load %arg3[%c0_2, %c0_3] : memref<16x32xf32, #tpu.memory_space<vmem>>, vector<16x32xf32>
    %5 = arith.truncf %4 : vector<16x32xf32> to vector<16x32xbf16>
    %c0_4 = arith.constant 0 : index
    %c0_5 = arith.constant 0 : index
    %6 = vector.load %arg4[%c0_4, %c0_5] : memref<32x32xf32, #tpu.memory_space<vmem>>, vector<32x32xf32>
    %7 = arith.truncf %6 : vector<32x32xf32> to vector<32x32xbf16>
    %cst = arith.constant dense<0.000000e+00> : vector<16x32xf32>
    %8 = tpu.matmul %5, %7, %cst {dimension_numbers = #tpu.dot_dimension_numbers<[1], [0], [0], [1], [0, 0, 1, 1], [], []>} : vector<16x32xbf16>, vector<32x32xbf16>, vector<16x32xf32> -> vector<16x32xf32>
    %9 = arith.addf %3, %8 : vector<16x32xf32>
    %c0_6 = arith.constant 0 : index
    %c0_7 = arith.constant 0 : index
    %10 = vector.load %arg7[%c0_6, %c0_7] : memref<16x32xf32, #tpu.memory_space<vmem>>, vector<16x32xf32>
    tpu.vector_store %arg7[%c0_6, %c0_7], %9 {strides = array<i32>} : memref<16x32xf32, #tpu.memory_space<vmem>>, vector<16x32xf32>,
    %c0_i32_8 = arith.constant 0 : i32
    %11 = arith.cmpi eq, %arg2, %c0_i32_8 : i32
    %12 = arith.extui %11 : i1 to i32
    %c0_i32_9 = arith.constant 0 : i32
    %13 = arith.cmpi ne, %12, %c0_i32_9 : i32
    scf.if %13 {
      %c0_10 = arith.constant 0 : index
      %c0_11 = arith.constant 0 : index
      %14 = vector.load %arg7[%c0_10, %c0_11] : memref<16x32xf32, #tpu.memory_space<vmem>>, vector<16x32xf32>
      %c0_12 = arith.constant 0 : index
      %c0_13 = arith.constant 0 : index
      %15 = vector.load %arg5[%c0_12, %c0_13] : memref<1x32xf32, #tpu.memory_space<vmem>>, vector<1x32xf32>
      %16 = vector.broadcast %15 : vector<1x32xf32> to vector<16x32xf32>
      %17 = arith.addf %14, %16 : vector<16x32xf32>
      %c0_14 = arith.constant 0 : index
      %c0_15 = arith.constant 0 : index
      %18 = vector.load %arg6[%c0_14, %c0_15] : memref<16x32xf32, #tpu.memory_space<vmem>>, vector<16x32xf32>
      tpu.vector_store %arg6[%c0_14, %c0_15], %17 {strides = array<i32>} : memref<16x32xf32, #tpu.memory_space<vmem>>, vector<16x32xf32>,
    } else {
    }
    return
  }
  func.func @transform_0(%arg0: i32, %arg1: i32, %arg2: i32) -> (i32, i32) {
    %c0_i32 = arith.constant 0 : i32
    return %arg0, %arg2 : i32, i32
  }
  func.func @transform_1(%arg0: i32, %arg1: i32, %arg2: i32) -> (i32, i32) {
    %c0_i32 = arith.constant 0 : i32
    return %arg2, %arg1 : i32, i32
  }
  func.func @transform_2(%arg0: i32, %arg1: i32, %arg2: i32) -> (i32, i32) {
    %c0_i32 = arith.constant 0 : i32
    %c0_i32_0 = arith.constant 0 : i32
    return %c0_i32, %arg1 : i32, i32
  }
  func.func @transform_3(%arg0: i32, %arg1: i32, %arg2: i32) -> (i32, i32) {
    %c0_i32 = arith.constant 0 : i32
    return %arg0, %arg1 : i32, i32
  }
}

module attributes {stable_mosaic.version = 11 : i64} {
  func.func @_proj_add_ln_kernel(%arg0: i32, %arg1: memref<16x32xf32, #tpu.memory_space<vmem>>, %arg2: memref<32x32xf32, #tpu.memory_space<vmem>>, %arg3: memref<1x32xf32, #tpu.memory_space<vmem>>, %arg4: memref<16x32xf32, #tpu.memory_space<vmem>>, %arg5: memref<1x32xf32, #tpu.memory_space<vmem>>, %arg6: memref<1x32xf32, #tpu.memory_space<vmem>>, %arg7: memref<16x32xf32, #tpu.memory_space<vmem>>) attributes {dimension_semantics = [#tpu.dimension_semantics<parallel>], iteration_bounds = array<i64: 1>, scalar_prefetch = 0 : i64, scratch_operands = 0 : i64, tpu.core_type = #tpu.core_type<tc>, window_params = [{transform_indices = @transform_0, window_bounds = array<i64: 16, 32>}, {pipeline_mode = #tpu.pipeline_mode<synchronous>, transform_indices = @transform_1, window_bounds = array<i64: 32, 32>}, {pipeline_mode = #tpu.pipeline_mode<synchronous>, transform_indices = @transform_2, window_bounds = array<i64: 1, 32>}, {transform_indices = @transform_3, window_bounds = array<i64: 16, 32>}, {pipeline_mode = #tpu.pipeline_mode<synchronous>, transform_indices = @transform_4, window_bounds = array<i64: 1, 32>}, {pipeline_mode = #tpu.pipeline_mode<synchronous>, transform_indices = @transform_5, window_bounds = array<i64: 1, 32>}, {transform_indices = @transform_6, window_bounds = array<i64: 16, 32>}]} {
    %c0 = arith.constant 0 : index
    %c0_0 = arith.constant 0 : index
    %0 = vector.load %arg1[%c0, %c0_0] : memref<16x32xf32, #tpu.memory_space<vmem>>, vector<16x32xf32>
    %1 = arith.truncf %0 : vector<16x32xf32> to vector<16x32xbf16>
    %c0_1 = arith.constant 0 : index
    %c0_2 = arith.constant 0 : index
    %2 = vector.load %arg2[%c0_1, %c0_2] : memref<32x32xf32, #tpu.memory_space<vmem>>, vector<32x32xf32>
    %3 = arith.truncf %2 : vector<32x32xf32> to vector<32x32xbf16>
    %cst = arith.constant dense<0.000000e+00> : vector<16x32xf32>
    %4 = tpu.matmul %1, %3, %cst {dimension_numbers = #tpu.dot_dimension_numbers<[1], [0], [0], [1], [0, 0, 1, 1], [], []>} : vector<16x32xbf16>, vector<32x32xbf16>, vector<16x32xf32> -> vector<16x32xf32>
    %c0_3 = arith.constant 0 : index
    %c0_4 = arith.constant 0 : index
    %5 = vector.load %arg3[%c0_3, %c0_4] : memref<1x32xf32, #tpu.memory_space<vmem>>, vector<1x32xf32>
    %6 = vector.broadcast %5 : vector<1x32xf32> to vector<16x32xf32>
    %7 = arith.addf %4, %6 : vector<16x32xf32>
    %c0_5 = arith.constant 0 : index
    %c0_6 = arith.constant 0 : index
    %8 = vector.load %arg4[%c0_5, %c0_6] : memref<16x32xf32, #tpu.memory_space<vmem>>, vector<16x32xf32>
    %9 = arith.addf %7, %8 : vector<16x32xf32>
    %cst_7 = arith.constant dense<0.000000e+00> : vector<16xf32>
    %10 = vector.multi_reduction <add>, %9, %cst_7 [1] : vector<16x32xf32> to vector<16xf32>
    %11 = vector.shape_cast %10 : vector<16xf32> to vector<16x1xf32>
    %cst_8 = arith.constant 3.200000e+01 : f32
    %12 = vector.broadcast %cst_8 : f32 to vector<16x1xf32>
    %13 = arith.divf %11, %12 : vector<16x1xf32>
    %14 = vector.broadcast %13 : vector<16x1xf32> to vector<16x32xf32>
    %15 = arith.subf %9, %14 : vector<16x32xf32>
    %16 = arith.mulf %15, %15 : vector<16x32xf32>
    %cst_9 = arith.constant dense<0.000000e+00> : vector<16xf32>
    %17 = vector.multi_reduction <add>, %16, %cst_9 [1] : vector<16x32xf32> to vector<16xf32>
    %18 = vector.shape_cast %17 : vector<16xf32> to vector<16x1xf32>
    %cst_10 = arith.constant 3.200000e+01 : f32
    %19 = vector.broadcast %cst_10 : f32 to vector<16x1xf32>
    %20 = arith.divf %18, %19 : vector<16x1xf32>
    %cst_11 = arith.constant 9.99999974E-6 : f32
    %21 = vector.broadcast %cst_11 : f32 to vector<16x1xf32>
    %22 = arith.addf %20, %21 : vector<16x1xf32>
    %23 = math.rsqrt %22 : vector<16x1xf32>
    %24 = vector.broadcast %23 : vector<16x1xf32> to vector<16x32xf32>
    %25 = arith.mulf %15, %24 : vector<16x32xf32>
    %c0_12 = arith.constant 0 : index
    %c0_13 = arith.constant 0 : index
    %26 = vector.load %arg5[%c0_12, %c0_13] : memref<1x32xf32, #tpu.memory_space<vmem>>, vector<1x32xf32>
    %27 = vector.broadcast %26 : vector<1x32xf32> to vector<16x32xf32>
    %28 = arith.mulf %25, %27 : vector<16x32xf32>
    %c0_14 = arith.constant 0 : index
    %c0_15 = arith.constant 0 : index
    %29 = vector.load %arg6[%c0_14, %c0_15] : memref<1x32xf32, #tpu.memory_space<vmem>>, vector<1x32xf32>
    %30 = vector.broadcast %29 : vector<1x32xf32> to vector<16x32xf32>
    %31 = arith.addf %28, %30 : vector<16x32xf32>
    %c0_16 = arith.constant 0 : index
    %c0_17 = arith.constant 0 : index
    %32 = vector.load %arg7[%c0_16, %c0_17] : memref<16x32xf32, #tpu.memory_space<vmem>>, vector<16x32xf32>
    tpu.vector_store %arg7[%c0_16, %c0_17], %31 {strides = array<i32>} : memref<16x32xf32, #tpu.memory_space<vmem>>, vector<16x32xf32>,
    return
  }
  func.func @transform_0(%arg0: i32) -> (i32, i32) {
    %c0_i32 = arith.constant 0 : i32
    %c0_i32_0 = arith.constant 0 : i32
    return %arg0, %c0_i32 : i32, i32
  }
  func.func @transform_1(%arg0: i32) -> (i32, i32) {
    %c0_i32 = arith.constant 0 : i32
    %c0_i32_0 = arith.constant 0 : i32
    %c0_i32_1 = arith.constant 0 : i32
    return %c0_i32, %c0_i32_0 : i32, i32
  }
  func.func @transform_2(%arg0: i32) -> (i32, i32) {
    %c0_i32 = arith.constant 0 : i32
    %c0_i32_0 = arith.constant 0 : i32
    %c0_i32_1 = arith.constant 0 : i32
    return %c0_i32, %c0_i32_0 : i32, i32
  }
  func.func @transform_3(%arg0: i32) -> (i32, i32) {
    %c0_i32 = arith.constant 0 : i32
    %c0_i32_0 = arith.constant 0 : i32
    return %arg0, %c0_i32 : i32, i32
  }
  func.func @transform_4(%arg0: i32) -> (i32, i32) {
    %c0_i32 = arith.constant 0 : i32
    %c0_i32_0 = arith.constant 0 : i32
    %c0_i32_1 = arith.constant 0 : i32
    return %c0_i32, %c0_i32_0 : i32, i32
  }
  func.func @transform_5(%arg0: i32) -> (i32, i32) {
    %c0_i32 = arith.constant 0 : i32
    %c0_i32_0 = arith.constant 0 : i32
    %c0_i32_1 = arith.constant 0 : i32
    return %c0_i32, %c0_i32_0 : i32, i32
  }
  func.func @transform_6(%arg0: i32) -> (i32, i32) {
    %c0_i32 = arith.constant 0 : i32
    %c0_i32_0 = arith.constant 0 : i32
    return %arg0, %c0_i32 : i32, i32
  }
}

module attributes {stable_mosaic.version = 11 : i64} {
  func.func @_linear_kernel(%arg0: i32, %arg1: i32, %arg2: i32, %arg3: memref<16x32xf32, #tpu.memory_space<vmem>>, %arg4: memref<32x64xf32, #tpu.memory_space<vmem>>, %arg5: memref<1x64xf32, #tpu.memory_space<vmem>>, %arg6: memref<16x64xf32, #tpu.memory_space<vmem>>, %arg7: memref<16x64xf32, #tpu.memory_space<vmem>>) attributes {dimension_semantics = [#tpu.dimension_semantics<parallel>, #tpu.dimension_semantics<parallel>, #tpu.dimension_semantics<arbitrary>], iteration_bounds = array<i64: 1, 1, 1>, scalar_prefetch = 0 : i64, scratch_operands = 1 : i64, tpu.core_type = #tpu.core_type<tc>, window_params = [{transform_indices = @transform_0, window_bounds = array<i64: 16, 32>}, {transform_indices = @transform_1, window_bounds = array<i64: 32, 64>}, {transform_indices = @transform_2, window_bounds = array<i64: 1, 64>}, {transform_indices = @transform_3, window_bounds = array<i64: 16, 64>}]} {
    %c0_i32 = arith.constant 0 : i32
    %0 = arith.cmpi eq, %arg2, %c0_i32 : i32
    %1 = arith.extui %0 : i1 to i32
    %c0_i32_0 = arith.constant 0 : i32
    %2 = arith.cmpi ne, %1, %c0_i32_0 : i32
    scf.if %2 {
      %cst_10 = arith.constant 0.000000e+00 : f32
      %14 = vector.broadcast %cst_10 : f32 to vector<16x64xf32>
      %c0_11 = arith.constant 0 : index
      %c0_12 = arith.constant 0 : index
      %15 = vector.load %arg7[%c0_11, %c0_12] : memref<16x64xf32, #tpu.memory_space<vmem>>, vector<16x64xf32>
      tpu.vector_store %arg7[%c0_11, %c0_12], %14 {strides = array<i32>} : memref<16x64xf32, #tpu.memory_space<vmem>>, vector<16x64xf32>,
    } else {
    }
    %c0 = arith.constant 0 : index
    %c0_1 = arith.constant 0 : index
    %3 = vector.load %arg7[%c0, %c0_1] : memref<16x64xf32, #tpu.memory_space<vmem>>, vector<16x64xf32>
    %c0_2 = arith.constant 0 : index
    %c0_3 = arith.constant 0 : index
    %4 = vector.load %arg3[%c0_2, %c0_3] : memref<16x32xf32, #tpu.memory_space<vmem>>, vector<16x32xf32>
    %5 = arith.truncf %4 : vector<16x32xf32> to vector<16x32xbf16>
    %c0_4 = arith.constant 0 : index
    %c0_5 = arith.constant 0 : index
    %6 = vector.load %arg4[%c0_4, %c0_5] : memref<32x64xf32, #tpu.memory_space<vmem>>, vector<32x64xf32>
    %7 = arith.truncf %6 : vector<32x64xf32> to vector<32x64xbf16>
    %cst = arith.constant dense<0.000000e+00> : vector<16x64xf32>
    %8 = tpu.matmul %5, %7, %cst {dimension_numbers = #tpu.dot_dimension_numbers<[1], [0], [0], [1], [0, 0, 1, 1], [], []>} : vector<16x32xbf16>, vector<32x64xbf16>, vector<16x64xf32> -> vector<16x64xf32>
    %9 = arith.addf %3, %8 : vector<16x64xf32>
    %c0_6 = arith.constant 0 : index
    %c0_7 = arith.constant 0 : index
    %10 = vector.load %arg7[%c0_6, %c0_7] : memref<16x64xf32, #tpu.memory_space<vmem>>, vector<16x64xf32>
    tpu.vector_store %arg7[%c0_6, %c0_7], %9 {strides = array<i32>} : memref<16x64xf32, #tpu.memory_space<vmem>>, vector<16x64xf32>,
    %c0_i32_8 = arith.constant 0 : i32
    %11 = arith.cmpi eq, %arg2, %c0_i32_8 : i32
    %12 = arith.extui %11 : i1 to i32
    %c0_i32_9 = arith.constant 0 : i32
    %13 = arith.cmpi ne, %12, %c0_i32_9 : i32
    scf.if %13 {
      %c0_10 = arith.constant 0 : index
      %c0_11 = arith.constant 0 : index
      %14 = vector.load %arg7[%c0_10, %c0_11] : memref<16x64xf32, #tpu.memory_space<vmem>>, vector<16x64xf32>
      %c0_12 = arith.constant 0 : index
      %c0_13 = arith.constant 0 : index
      %15 = vector.load %arg5[%c0_12, %c0_13] : memref<1x64xf32, #tpu.memory_space<vmem>>, vector<1x64xf32>
      %16 = vector.broadcast %15 : vector<1x64xf32> to vector<16x64xf32>
      %17 = arith.addf %14, %16 : vector<16x64xf32>
      %c0_14 = arith.constant 0 : index
      %c0_15 = arith.constant 0 : index
      %18 = vector.load %arg6[%c0_14, %c0_15] : memref<16x64xf32, #tpu.memory_space<vmem>>, vector<16x64xf32>
      tpu.vector_store %arg6[%c0_14, %c0_15], %17 {strides = array<i32>} : memref<16x64xf32, #tpu.memory_space<vmem>>, vector<16x64xf32>,
    } else {
    }
    return
  }
  func.func @transform_0(%arg0: i32, %arg1: i32, %arg2: i32) -> (i32, i32) {
    %c0_i32 = arith.constant 0 : i32
    return %arg0, %arg2 : i32, i32
  }
  func.func @transform_1(%arg0: i32, %arg1: i32, %arg2: i32) -> (i32, i32) {
    %c0_i32 = arith.constant 0 : i32
    return %arg2, %arg1 : i32, i32
  }
  func.func @transform_2(%arg0: i32, %arg1: i32, %arg2: i32) -> (i32, i32) {
    %c0_i32 = arith.constant 0 : i32
    %c0_i32_0 = arith.constant 0 : i32
    return %c0_i32, %arg1 : i32, i32
  }
  func.func @transform_3(%arg0: i32, %arg1: i32, %arg2: i32) -> (i32, i32) {
    %c0_i32 = arith.constant 0 : i32
    return %arg0, %arg1 : i32, i32
  }
}

module attributes {stable_mosaic.version = 11 : i64} {
  func.func @_linear_kernel(%arg0: i32, %arg1: i32, %arg2: i32, %arg3: memref<16x32xf32, #tpu.memory_space<vmem>>, %arg4: memref<32x16xf32, #tpu.memory_space<vmem>>, %arg5: memref<1x16xf32, #tpu.memory_space<vmem>>, %arg6: memref<16x16xf32, #tpu.memory_space<vmem>>, %arg7: memref<16x16xf32, #tpu.memory_space<vmem>>) attributes {dimension_semantics = [#tpu.dimension_semantics<parallel>, #tpu.dimension_semantics<parallel>, #tpu.dimension_semantics<arbitrary>], iteration_bounds = array<i64: 1, 1, 1>, scalar_prefetch = 0 : i64, scratch_operands = 1 : i64, tpu.core_type = #tpu.core_type<tc>, window_params = [{transform_indices = @transform_0, window_bounds = array<i64: 16, 32>}, {transform_indices = @transform_1, window_bounds = array<i64: 32, 16>}, {transform_indices = @transform_2, window_bounds = array<i64: 1, 16>}, {transform_indices = @transform_3, window_bounds = array<i64: 16, 16>}]} {
    %c0_i32 = arith.constant 0 : i32
    %0 = arith.cmpi eq, %arg2, %c0_i32 : i32
    %1 = arith.extui %0 : i1 to i32
    %c0_i32_0 = arith.constant 0 : i32
    %2 = arith.cmpi ne, %1, %c0_i32_0 : i32
    scf.if %2 {
      %cst_10 = arith.constant 0.000000e+00 : f32
      %14 = vector.broadcast %cst_10 : f32 to vector<16x16xf32>
      %c0_11 = arith.constant 0 : index
      %c0_12 = arith.constant 0 : index
      %15 = vector.load %arg7[%c0_11, %c0_12] : memref<16x16xf32, #tpu.memory_space<vmem>>, vector<16x16xf32>
      tpu.vector_store %arg7[%c0_11, %c0_12], %14 {strides = array<i32>} : memref<16x16xf32, #tpu.memory_space<vmem>>, vector<16x16xf32>,
    } else {
    }
    %c0 = arith.constant 0 : index
    %c0_1 = arith.constant 0 : index
    %3 = vector.load %arg7[%c0, %c0_1] : memref<16x16xf32, #tpu.memory_space<vmem>>, vector<16x16xf32>
    %c0_2 = arith.constant 0 : index
    %c0_3 = arith.constant 0 : index
    %4 = vector.load %arg3[%c0_2, %c0_3] : memref<16x32xf32, #tpu.memory_space<vmem>>, vector<16x32xf32>
    %5 = arith.truncf %4 : vector<16x32xf32> to vector<16x32xbf16>
    %c0_4 = arith.constant 0 : index
    %c0_5 = arith.constant 0 : index
    %6 = vector.load %arg4[%c0_4, %c0_5] : memref<32x16xf32, #tpu.memory_space<vmem>>, vector<32x16xf32>
    %7 = arith.truncf %6 : vector<32x16xf32> to vector<32x16xbf16>
    %cst = arith.constant dense<0.000000e+00> : vector<16x16xf32>
    %8 = tpu.matmul %5, %7, %cst {dimension_numbers = #tpu.dot_dimension_numbers<[1], [0], [0], [1], [0, 0, 1, 1], [], []>} : vector<16x32xbf16>, vector<32x16xbf16>, vector<16x16xf32> -> vector<16x16xf32>
    %9 = arith.addf %3, %8 : vector<16x16xf32>
    %c0_6 = arith.constant 0 : index
    %c0_7 = arith.constant 0 : index
    %10 = vector.load %arg7[%c0_6, %c0_7] : memref<16x16xf32, #tpu.memory_space<vmem>>, vector<16x16xf32>
    tpu.vector_store %arg7[%c0_6, %c0_7], %9 {strides = array<i32>} : memref<16x16xf32, #tpu.memory_space<vmem>>, vector<16x16xf32>,
    %c0_i32_8 = arith.constant 0 : i32
    %11 = arith.cmpi eq, %arg2, %c0_i32_8 : i32
    %12 = arith.extui %11 : i1 to i32
    %c0_i32_9 = arith.constant 0 : i32
    %13 = arith.cmpi ne, %12, %c0_i32_9 : i32
    scf.if %13 {
      %c0_10 = arith.constant 0 : index
      %c0_11 = arith.constant 0 : index
      %14 = vector.load %arg7[%c0_10, %c0_11] : memref<16x16xf32, #tpu.memory_space<vmem>>, vector<16x16xf32>
      %c0_12 = arith.constant 0 : index
      %c0_13 = arith.constant 0 : index
      %15 = vector.load %arg5[%c0_12, %c0_13] : memref<1x16xf32, #tpu.memory_space<vmem>>, vector<1x16xf32>
      %16 = vector.broadcast %15 : vector<1x16xf32> to vector<16x16xf32>
      %17 = arith.addf %14, %16 : vector<16x16xf32>
      %c0_14 = arith.constant 0 : index
      %c0_15 = arith.constant 0 : index
      %18 = vector.load %arg6[%c0_14, %c0_15] : memref<16x16xf32, #tpu.memory_space<vmem>>, vector<16x16xf32>
      tpu.vector_store %arg6[%c0_14, %c0_15], %17 {strides = array<i32>} : memref<16x16xf32, #tpu.memory_space<vmem>>, vector<16x16xf32>,
    } else {
    }
    return
  }
  func.func @transform_0(%arg0: i32, %arg1: i32, %arg2: i32) -> (i32, i32) {
    %c0_i32 = arith.constant 0 : i32
    return %arg0, %arg2 : i32, i32
  }
  func.func @transform_1(%arg0: i32, %arg1: i32, %arg2: i32) -> (i32, i32) {
    %c0_i32 = arith.constant 0 : i32
    return %arg2, %arg1 : i32, i32
  }
  func.func @transform_2(%arg0: i32, %arg1: i32, %arg2: i32) -> (i32, i32) {
    %c0_i32 = arith.constant 0 : i32
    %c0_i32_0 = arith.constant 0 : i32
    return %c0_i32, %arg1 : i32, i32
  }
  func.func @transform_3(%arg0: i32, %arg1: i32, %arg2: i32) -> (i32, i32) {
    %c0_i32 = arith.constant 0 : i32
    return %arg0, %arg1 : i32, i32
  }
}

module attributes {stable_mosaic.version = 11 : i64} {
  func.func @_ffn_ln_kernel(%arg0: i32, %arg1: memref<16x32xf32, #tpu.memory_space<vmem>>, %arg2: memref<32x64xf32, #tpu.memory_space<vmem>>, %arg3: memref<1x64xf32, #tpu.memory_space<vmem>>, %arg4: memref<64x32xf32, #tpu.memory_space<vmem>>, %arg5: memref<1x32xf32, #tpu.memory_space<vmem>>, %arg6: memref<1x32xf32, #tpu.memory_space<vmem>>, %arg7: memref<1x32xf32, #tpu.memory_space<vmem>>, %arg8: memref<16x32xf32, #tpu.memory_space<vmem>>) attributes {dimension_semantics = [#tpu.dimension_semantics<parallel>], iteration_bounds = array<i64: 1>, scalar_prefetch = 0 : i64, scratch_operands = 0 : i64, tpu.core_type = #tpu.core_type<tc>, window_params = [{transform_indices = @transform_0, window_bounds = array<i64: 16, 32>}, {pipeline_mode = #tpu.pipeline_mode<synchronous>, transform_indices = @transform_1, window_bounds = array<i64: 32, 64>}, {pipeline_mode = #tpu.pipeline_mode<synchronous>, transform_indices = @transform_2, window_bounds = array<i64: 1, 64>}, {pipeline_mode = #tpu.pipeline_mode<synchronous>, transform_indices = @transform_3, window_bounds = array<i64: 64, 32>}, {pipeline_mode = #tpu.pipeline_mode<synchronous>, transform_indices = @transform_4, window_bounds = array<i64: 1, 32>}, {pipeline_mode = #tpu.pipeline_mode<synchronous>, transform_indices = @transform_5, window_bounds = array<i64: 1, 32>}, {pipeline_mode = #tpu.pipeline_mode<synchronous>, transform_indices = @transform_6, window_bounds = array<i64: 1, 32>}, {transform_indices = @transform_7, window_bounds = array<i64: 16, 32>}]} {
    %c0 = arith.constant 0 : index
    %c0_0 = arith.constant 0 : index
    %0 = vector.load %arg1[%c0, %c0_0] : memref<16x32xf32, #tpu.memory_space<vmem>>, vector<16x32xf32>
    %1 = arith.truncf %0 : vector<16x32xf32> to vector<16x32xbf16>
    %c0_1 = arith.constant 0 : index
    %c0_2 = arith.constant 0 : index
    %2 = vector.load %arg2[%c0_1, %c0_2] : memref<32x64xf32, #tpu.memory_space<vmem>>, vector<32x64xf32>
    %3 = arith.truncf %2 : vector<32x64xf32> to vector<32x64xbf16>
    %cst = arith.constant dense<0.000000e+00> : vector<16x64xf32>
    %4 = tpu.matmul %1, %3, %cst {dimension_numbers = #tpu.dot_dimension_numbers<[1], [0], [0], [1], [0, 0, 1, 1], [], []>} : vector<16x32xbf16>, vector<32x64xbf16>, vector<16x64xf32> -> vector<16x64xf32>
    %c0_3 = arith.constant 0 : index
    %c0_4 = arith.constant 0 : index
    %5 = vector.load %arg3[%c0_3, %c0_4] : memref<1x64xf32, #tpu.memory_space<vmem>>, vector<1x64xf32>
    %6 = vector.broadcast %5 : vector<1x64xf32> to vector<16x64xf32>
    %7 = arith.addf %4, %6 : vector<16x64xf32>
    %cst_5 = arith.constant 0.000000e+00 : f32
    %8 = vector.broadcast %cst_5 : f32 to vector<16x64xf32>
    %9 = arith.maximumf %7, %8 : vector<16x64xf32>
    %10 = arith.truncf %9 : vector<16x64xf32> to vector<16x64xbf16>
    %c0_6 = arith.constant 0 : index
    %c0_7 = arith.constant 0 : index
    %11 = vector.load %arg4[%c0_6, %c0_7] : memref<64x32xf32, #tpu.memory_space<vmem>>, vector<64x32xf32>
    %12 = arith.truncf %11 : vector<64x32xf32> to vector<64x32xbf16>
    %cst_8 = arith.constant dense<0.000000e+00> : vector<16x32xf32>
    %13 = tpu.matmul %10, %12, %cst_8 {dimension_numbers = #tpu.dot_dimension_numbers<[1], [0], [0], [1], [0, 0, 1, 1], [], []>} : vector<16x64xbf16>, vector<64x32xbf16>, vector<16x32xf32> -> vector<16x32xf32>
    %c0_9 = arith.constant 0 : index
    %c0_10 = arith.constant 0 : index
    %14 = vector.load %arg5[%c0_9, %c0_10] : memref<1x32xf32, #tpu.memory_space<vmem>>, vector<1x32xf32>
    %15 = vector.broadcast %14 : vector<1x32xf32> to vector<16x32xf32>
    %16 = arith.addf %13, %15 : vector<16x32xf32>
    %17 = arith.addf %0, %16 : vector<16x32xf32>
    %cst_11 = arith.constant dense<0.000000e+00> : vector<16xf32>
    %18 = vector.multi_reduction <add>, %17, %cst_11 [1] : vector<16x32xf32> to vector<16xf32>
    %19 = vector.shape_cast %18 : vector<16xf32> to vector<16x1xf32>
    %cst_12 = arith.constant 3.200000e+01 : f32
    %20 = vector.broadcast %cst_12 : f32 to vector<16x1xf32>
    %21 = arith.divf %19, %20 : vector<16x1xf32>
    %22 = vector.broadcast %21 : vector<16x1xf32> to vector<16x32xf32>
    %23 = arith.subf %17, %22 : vector<16x32xf32>
    %24 = arith.mulf %23, %23 : vector<16x32xf32>
    %cst_13 = arith.constant dense<0.000000e+00> : vector<16xf32>
    %25 = vector.multi_reduction <add>, %24, %cst_13 [1] : vector<16x32xf32> to vector<16xf32>
    %26 = vector.shape_cast %25 : vector<16xf32> to vector<16x1xf32>
    %cst_14 = arith.constant 3.200000e+01 : f32
    %27 = vector.broadcast %cst_14 : f32 to vector<16x1xf32>
    %28 = arith.divf %26, %27 : vector<16x1xf32>
    %cst_15 = arith.constant 9.99999974E-6 : f32
    %29 = vector.broadcast %cst_15 : f32 to vector<16x1xf32>
    %30 = arith.addf %28, %29 : vector<16x1xf32>
    %31 = math.rsqrt %30 : vector<16x1xf32>
    %32 = vector.broadcast %31 : vector<16x1xf32> to vector<16x32xf32>
    %33 = arith.mulf %23, %32 : vector<16x32xf32>
    %c0_16 = arith.constant 0 : index
    %c0_17 = arith.constant 0 : index
    %34 = vector.load %arg6[%c0_16, %c0_17] : memref<1x32xf32, #tpu.memory_space<vmem>>, vector<1x32xf32>
    %35 = vector.broadcast %34 : vector<1x32xf32> to vector<16x32xf32>
    %36 = arith.mulf %33, %35 : vector<16x32xf32>
    %c0_18 = arith.constant 0 : index
    %c0_19 = arith.constant 0 : index
    %37 = vector.load %arg7[%c0_18, %c0_19] : memref<1x32xf32, #tpu.memory_space<vmem>>, vector<1x32xf32>
    %38 = vector.broadcast %37 : vector<1x32xf32> to vector<16x32xf32>
    %39 = arith.addf %36, %38 : vector<16x32xf32>
    %c0_20 = arith.constant 0 : index
    %c0_21 = arith.constant 0 : index
    %40 = vector.load %arg8[%c0_20, %c0_21] : memref<16x32xf32, #tpu.memory_space<vmem>>, vector<16x32xf32>
    tpu.vector_store %arg8[%c0_20, %c0_21], %39 {strides = array<i32>} : memref<16x32xf32, #tpu.memory_space<vmem>>, vector<16x32xf32>,
    return
  }
  func.func @transform_0(%arg0: i32) -> (i32, i32) {
    %c0_i32 = arith.constant 0 : i32
    %c0_i32_0 = arith.constant 0 : i32
    return %arg0, %c0_i32 : i32, i32
  }
  func.func @transform_1(%arg0: i32) -> (i32, i32) {
    %c0_i32 = arith.constant 0 : i32
    %c0_i32_0 = arith.constant 0 : i32
    %c0_i32_1 = arith.constant 0 : i32
    return %c0_i32, %c0_i32_0 : i32, i32
  }
  func.func @transform_2(%arg0: i32) -> (i32, i32) {
    %c0_i32 = arith.constant 0 : i32
    %c0_i32_0 = arith.constant 0 : i32
    %c0_i32_1 = arith.constant 0 : i32
    return %c0_i32, %c0_i32_0 : i32, i32
  }
  func.func @transform_3(%arg0: i32) -> (i32, i32) {
    %c0_i32 = arith.constant 0 : i32
    %c0_i32_0 = arith.constant 0 : i32
    %c0_i32_1 = arith.constant 0 : i32
    return %c0_i32, %c0_i32_0 : i32, i32
  }
  func.func @transform_4(%arg0: i32) -> (i32, i32) {
    %c0_i32 = arith.constant 0 : i32
    %c0_i32_0 = arith.constant 0 : i32
    %c0_i32_1 = arith.constant 0 : i32
    return %c0_i32, %c0_i32_0 : i32, i32
  }
  func.func @transform_5(%arg0: i32) -> (i32, i32) {
    %c0_i32 = arith.constant 0 : i32
    %c0_i32_0 = arith.constant 0 : i32
    %c0_i32_1 = arith.constant 0 : i32
    return %c0_i32, %c0_i32_0 : i32, i32
  }
  func.func @transform_6(%arg0: i32) -> (i32, i32) {
    %c0_i32 = arith.constant 0 : i32
    %c0_i32_0 = arith.constant 0 : i32
    %c0_i32_1 = arith.constant 0 : i32
    return %c0_i32, %c0_i32_0 : i32, i32
  }
  func.func @transform_7(%arg0: i32) -> (i32, i32) {
    %c0_i32 = arith.constant 0 : i32
    %c0_i32_0 = arith.constant 0 : i32
    return %arg0, %c0_i32 : i32, i32
  }
}

</mosaic_0001>

<llo_original>
// kernel: decoder_forward.20
$region0: #{decoder_forward.20}
  #allocation0 [shape = 'u32[]', space=smem, size = 0x4, offset = 0x4, fixed_abs, tag = 'smem constant byte address 0x4 - core index']
  #allocation1 [shape = 'u32[144,128]{1,0:T(1,128)}', space=vmem, size = 0x12000, scoped, tag = 'internal scratch']
  #allocation2 [shape = 'f32[16,32]{1,0:T(8,128)}', space=vmem, size = 0x2000, scoped, tag = 'scratch operand']
  %s0 = inlined_call_operand.vmem [shape: f32[16,32], index: 0, kind: input, shape index: {}]
  %s1 = inlined_call_operand.vmem [shape: f32[32,32], index: 1, kind: input, shape index: {}]
  %s2 = inlined_call_operand.vmem [shape: f32[1,32], index: 2, kind: input, shape index: {}]
  %s3 = inlined_call_operand.vmem [shape: f32[16,32], index: 3, kind: output, shape index: {}]
  %s4 = sld [smem:[#allocation0]]
  $region30: #{decoder_forward.20} parent=0
    _
  %s6 = ssub.s32 1, %s4
  %s7 = scalar_select 0, %s6, %s4
  // Predicated region
  $region2: #{decoder_forward.20} parent=0 // pred_check
    _
  $region3: #{decoder_forward.20} parent=0 // pred_check_branch
    %9 = sbr.rel (0) target = $region5
  $region4: #{decoder_forward.20} parent=0 // pred_region
    _
  $region5: #{decoder_forward.20} parent=0 // pred_fallthru
    _
  // Predicated region
  $region6: #{decoder_forward.20} parent=0 // pred_check
    _
  $region7: #{decoder_forward.20} parent=0 // pred_check_branch
    %11 = sbr.rel (0) target = $region9
  $region8: #{decoder_forward.20} parent=0 // pred_region
    _
  $region9: #{decoder_forward.20} parent=0 // pred_fallthru
    _
  // Predicated region
  $region10: #{decoder_forward.20} parent=0 // pred_check
    _
  $region11: #{decoder_forward.20} parent=0 // pred_check_branch
    %13 = sbr.rel (0) target = $region13
  $region12: #{decoder_forward.20} parent=0 // pred_region
    _
  $region13: #{decoder_forward.20} parent=0 // pred_fallthru
    _
  %p15 = scmp.eq.s32.totalorder 0, 0
  // Predicated region
  $region14: #{decoder_forward.20} parent=0 // pred_check
    %p16 = pneg %p15
  $region15: #{decoder_forward.20} parent=0 // pred_check_branch
    %18 = sbr.rel (%p16) target = $region17
  $region16: #{decoder_forward.20} parent=0 // pred_region
    %vm19 = vcmask 261120
    %20 = vst.msk [vmem:[#allocation2] sm:$0xff] %vm19, 0.0
    %21 = vst.msk [vmem:[#allocation2 + $0x8] sm:$0xff] %vm19, 0.0
  $region17: #{decoder_forward.20} parent=0 // pred_fallthru
    _
  %v22 = vld [vmem:[#allocation2] sm:$0xff]
  %v23 = vld [vmem:[#allocation2 + $0x8] sm:$0xff]
  %v24 = vld [vmem:[%s0] sm:$0xff]
  %v25 = vld [vmem:[%s0 + $0x8] sm:$0xff]
  %v26 = vpack.c.bf16 %v25, %v24
  %v27 = vld [vmem:[%s1] sm:$0xff]
  %v28 = vld [vmem:[%s1 + $0x8] sm:$0xff]
  %v29 = vld [vmem:[%s1 + $0x10] sm:$0xff]
  %v30 = vld [vmem:[%s1 + $0x18] sm:$0xff]
  %v31 = vpack.c.bf16 %v28, %v27
  %v32 = vpack.c.bf16 %v30, %v29
  %vm33 = vcmask 261120
  %v35 = vsel %vm33, %v26, 0
  %37 = vmatprep.subr.bf16.mxu0 0
  %38 = vmatpush1.bf16.msra.mxu0 %v31
  %39 = vmatprep.subr.bf16.mxu0 0
  %40 = vmatpush1.bf16.msra.mxu0 %v32
  %41 = vmatprep.subr.bf16.mxu0 0
  %42 = vmatpush1.bf16.msra.mxu0 0
  %43 = vmatprep.subr.bf16.mxu0 0
  %44 = vmatpush1.bf16.msra.mxu0 0
  %45 = vmatprep.subr.bf16.mxu0 0
  %46 = vmatpush1.bf16.msra.mxu0 0
  %47 = vmatprep.subr.bf16.mxu0 0
  %48 = vmatpush1.bf16.msra.mxu0 0
  %49 = vmatprep.subr.bf16.mxu0 0
  %50 = vmatpush1.bf16.msra.mxu0 0
  %51 = vmatprep.subr.bf16.mxu0 0
  %52 = vmatpush1.bf16.msra.mxu0 0
  %53 = vmatprep.subr.bf16.mxu0 0
  %54 = vmatpush1.bf16.msra.mxu0 0
  %55 = vmatprep.subr.bf16.mxu0 0
  %56 = vmatpush1.bf16.msra.mxu0 0
  %57 = vmatprep.subr.bf16.mxu0 0
  %58 = vmatpush1.bf16.msra.mxu0 0
  %59 = vmatprep.subr.bf16.mxu0 0
  %60 = vmatpush1.bf16.msra.mxu0 0
  %61 = vmatprep.subr.bf16.mxu0 0
  %62 = vmatpush1.bf16.msra.mxu0 0
  %63 = vmatprep.subr.bf16.mxu0 0
  %64 = vmatpush1.bf16.msra.mxu0 0
  %65 = vmatprep.subr.bf16.mxu0 0
  %66 = vmatpush1.bf16.msra.mxu0 0
  %67 = vmatprep.subr.bf16.mxu0 0
  %68 = vmatpush1.bf16.msra.mxu0 0
  %69 = vmatprep.mubr.bf16.mxu0 0
  %70 = vmatmul.mubr.bf16.gmra.mrb[0].mxu0 %v35
  %v71 = vpop.f32.mrb[0].mxu0
  %v72 = vadd.f32 0.0, %v71
  %v73 = vpop.f32.mrb[0].mxu0
  %v74 = vpop.f32.mrb[0].mxu0
  %v75 = vadd.f32 0.0, %v74
  %v76 = vpop.f32.mrb[0].mxu0
  %77 = vdwg.mxu0
  %v78 = vadd.f32 %v22, %v72
  %v79 = vadd.f32 %v23, %v75
  %80 = vst.msk [vmem:[#allocation2] sm:$0xff] %vm33, %v78
  %81 = vst.msk [vmem:[#allocation2 + $0x8] sm:$0xff] %vm33, %v79
  // Predicated region
  $region18: #{decoder_forward.20} parent=0 // pred_check
    %p82 = pneg %p15
  $region19: #{decoder_forward.20} parent=0 // pred_check_branch
    %84 = sbr.rel (%p82) target = $region21
  $region20: #{decoder_forward.20} parent=0 // pred_region
    %v85 = vld [vmem:[#allocation2] sm:$0xff]
    %v86 = vld [vmem:[#allocation2 + $0x8] sm:$0xff]
    %v87 = vld [vmem:[%s2] sm:$0x1]
    %v89 = vlaneseq
    %v90 = vshrl.u32 %v89, 7
    %v91 = vsub.s32 0, %v90
    %v92 = vrot.slane %v87, %v91
    %v94 = vadd.f32 %v85, %v92
    %v95 = vadd.f32 %v86, %v92
    %96 = vst.msk [vmem:[%s3] sm:$0xff] %vm33, %v94
    %97 = vst.msk [vmem:[%s3 + $0x8] sm:$0xff] %vm33, %v95
  $region21: #{decoder_forward.20} parent=0 // pred_fallthru
    _
  // Predicated region
  $region22: #{decoder_forward.20} parent=0 // pred_check
    _
  $region23: #{decoder_forward.20} parent=0 // pred_check_branch
    %99 = sbr.rel (0) target = $region25
  $region24: #{decoder_forward.20} parent=0 // pred_region
    _
  $region25: #{decoder_forward.20} parent=0 // pred_fallthru
    _
  // Predicated region
  $region26: #{decoder_forward.20} parent=0 // pred_check
    _
  $region27: #{decoder_forward.20} parent=0 // pred_check_branch
    %101 = sbr.rel (0) target = $region29
  $region28: #{decoder_forward.20} parent=0 // pred_region
    _
  $region29: #{decoder_forward.20} parent=0 // pred_fallthru
    _

// kernel: decoder_forward.17
$region0: #{decoder_forward.17}
  #allocation0 [shape = 'u32[]', space=smem, size = 0x4, offset = 0x4, fixed_abs, tag = 'smem constant byte address 0x4 - core index']
  #allocation1 [shape = 'u32[144,128]{1,0:T(1,128)}', space=vmem, size = 0x12000, scoped, tag = 'internal scratch']
  #allocation2 [shape = 'f32[16,96]{1,0:T(8,128)}', space=vmem, size = 0x2000, scoped, tag = 'scratch operand']
  %s0 = inlined_call_operand.vmem [shape: f32[16,32], index: 0, kind: input, shape index: {}]
  %s1 = inlined_call_operand.vmem [shape: f32[32,96], index: 1, kind: input, shape index: {}]
  %s2 = inlined_call_operand.vmem [shape: f32[1,96], index: 2, kind: input, shape index: {}]
  %s3 = inlined_call_operand.vmem [shape: f32[16,96], index: 3, kind: output, shape index: {}]
  %s4 = sld [smem:[#allocation0]]
  $region30: #{decoder_forward.17} parent=0
    _
  %s6 = ssub.s32 1, %s4
  %s7 = scalar_select 0, %s6, %s4
  // Predicated region
  $region2: #{decoder_forward.17} parent=0 // pred_check
    _
  $region3: #{decoder_forward.17} parent=0 // pred_check_branch
    %9 = sbr.rel (0) target = $region5
  $region4: #{decoder_forward.17} parent=0 // pred_region
    _
  $region5: #{decoder_forward.17} parent=0 // pred_fallthru
    _
  // Predicated region
  $region6: #{decoder_forward.17} parent=0 // pred_check
    _
  $region7: #{decoder_forward.17} parent=0 // pred_check_branch
    %11 = sbr.rel (0) target = $region9
  $region8: #{decoder_forward.17} parent=0 // pred_region
    _
  $region9: #{decoder_forward.17} parent=0 // pred_fallthru
    _
  // Predicated region
  $region10: #{decoder_forward.17} parent=0 // pred_check
    _
  $region11: #{decoder_forward.17} parent=0 // pred_check_branch
    %13 = sbr.rel (0) target = $region13
  $region12: #{decoder_forward.17} parent=0 // pred_region
    _
  $region13: #{decoder_forward.17} parent=0 // pred_fallthru
    _
  %p15 = scmp.eq.s32.totalorder 0, 0
  // Predicated region
  $region14: #{decoder_forward.17} parent=0 // pred_check
    %p16 = pneg %p15
  $region15: #{decoder_forward.17} parent=0 // pred_check_branch
    %18 = sbr.rel (%p16) target = $region17
  $region16: #{decoder_forward.17} parent=0 // pred_region
    %vm19 = vcmask 785408
    %20 = vst.msk [vmem:[#allocation2] sm:$0xff] %vm19, 0.0
    %21 = vst.msk [vmem:[#allocation2 + $0x8] sm:$0xff] %vm19, 0.0
  $region17: #{decoder_forward.17} parent=0 // pred_fallthru
    _
  %v22 = vld [vmem:[#allocation2] sm:$0xff]
  %v23 = vld [vmem:[#allocation2 + $0x8] sm:$0xff]
  %v24 = vld [vmem:[%s0] sm:$0xff]
  %v25 = vld [vmem:[%s0 + $0x8] sm:$0xff]
  %v26 = vpack.c.bf16 %v25, %v24
  %v27 = vld [vmem:[%s1] sm:$0xff]
  %v28 = vld [vmem:[%s1 + $0x8] sm:$0xff]
  %v29 = vld [vmem:[%s1 + $0x10] sm:$0xff]
  %v30 = vld [vmem:[%s1 + $0x18] sm:$0xff]
  %v31 = vpack.c.bf16 %v28, %v27
  %v32 = vpack.c.bf16 %v30, %v29
  %vm33 = vcmask 261120
  %v35 = vsel %vm33, %v26, 0
  %37 = vmatprep.subr.bf16.mxu0 0
  %38 = vmatpush1.bf16.msra.mxu0 %v31
  %39 = vmatprep.subr.bf16.mxu0 0
  %40 = vmatpush1.bf16.msra.mxu0 %v32
  %41 = vmatprep.subr.bf16.mxu0 0
  %42 = vmatpush1.bf16.msra.mxu0 0
  %43 = vmatprep.subr.bf16.mxu0 0
  %44 = vmatpush1.bf16.msra.mxu0 0
  %45 = vmatprep.subr.bf16.mxu0 0
  %46 = vmatpush1.bf16.msra.mxu0 0
  %47 = vmatprep.subr.bf16.mxu0 0
  %48 = vmatpush1.bf16.msra.mxu0 0
  %49 = vmatprep.subr.bf16.mxu0 0
  %50 = vmatpush1.bf16.msra.mxu0 0
  %51 = vmatprep.subr.bf16.mxu0 0
  %52 = vmatpush1.bf16.msra.mxu0 0
  %53 = vmatprep.subr.bf16.mxu0 0
  %54 = vmatpush1.bf16.msra.mxu0 0
  %55 = vmatprep.subr.bf16.mxu0 0
  %56 = vmatpush1.bf16.msra.mxu0 0
  %57 = vmatprep.subr.bf16.mxu0 0
  %58 = vmatpush1.bf16.msra.mxu0 0
  %59 = vmatprep.subr.bf16.mxu0 0
  %60 = vmatpush1.bf16.msra.mxu0 0
  %61 = vmatprep.subr.bf16.mxu0 0
  %62 = vmatpush1.bf16.msra.mxu0 0
  %63 = vmatprep.subr.bf16.mxu0 0
  %64 = vmatpush1.bf16.msra.mxu0 0
  %65 = vmatprep.subr.bf16.mxu0 0
  %66 = vmatpush1.bf16.msra.mxu0 0
  %67 = vmatprep.subr.bf16.mxu0 0
  %68 = vmatpush1.bf16.msra.mxu0 0
  %69 = vmatprep.mubr.bf16.mxu0 0
  %70 = vmatmul.mubr.bf16.gmra.mrb[0].mxu0 %v35
  %v71 = vpop.f32.mrb[0].mxu0
  %v72 = vadd.f32 0.0, %v71
  %v73 = vpop.f32.mrb[0].mxu0
  %v74 = vpop.f32.mrb[0].mxu0
  %v75 = vadd.f32 0.0, %v74
  %v76 = vpop.f32.mrb[0].mxu0
  %77 = vdwg.mxu0
  %v78 = vadd.f32 %v22, %v72
  %v79 = vadd.f32 %v23, %v75
  %vm80 = vcmask 785408
  %81 = vst.msk [vmem:[#allocation2] sm:$0xff] %vm80, %v78
  %82 = vst.msk [vmem:[#allocation2 + $0x8] sm:$0xff] %vm80, %v79
  // Predicated region
  $region18: #{decoder_forward.17} parent=0 // pred_check
    %p83 = pneg %p15
  $region19: #{decoder_forward.17} parent=0 // pred_check_branch
    %85 = sbr.rel (%p83) target = $region21
  $region20: #{decoder_forward.17} parent=0 // pred_region
    %v86 = vld [vmem:[#allocation2] sm:$0xff]
    %v87 = vld [vmem:[#allocation2 + $0x8] sm:$0xff]
    %v88 = vld [vmem:[%s2] sm:$0x1]
    %v90 = vlaneseq
    %v91 = vshrl.u32 %v90, 7
    %v92 = vsub.s32 0, %v91
    %v93 = vrot.slane %v88, %v92
    %v95 = vadd.f32 %v86, %v93
    %v96 = vadd.f32 %v87, %v93
    %97 = vst.msk [vmem:[%s3] sm:$0xff] %vm80, %v95
    %98 = vst.msk [vmem:[%s3 + $0x8] sm:$0xff] %vm80, %v96
  $region21: #{decoder_forward.17} parent=0 // pred_fallthru
    _
  // Predicated region
  $region22: #{decoder_forward.17} parent=0 // pred_check
    _
  $region23: #{decoder_forward.17} parent=0 // pred_check_branch
    %100 = sbr.rel (0) target = $region25
  $region24: #{decoder_forward.17} parent=0 // pred_region
    _
  $region25: #{decoder_forward.17} parent=0 // pred_fallthru
    _
  // Predicated region
  $region26: #{decoder_forward.17} parent=0 // pred_check
    _
  $region27: #{decoder_forward.17} parent=0 // pred_check_branch
    %102 = sbr.rel (0) target = $region29
  $region28: #{decoder_forward.17} parent=0 // pred_region
    _
  $region29: #{decoder_forward.17} parent=0 // pred_fallthru
    _

// kernel: decoder_forward.19
$region0: #{decoder_forward.19}
  #allocation0 [shape = 'u32[]', space=smem, size = 0x4, offset = 0x4, fixed_abs, tag = 'smem constant byte address 0x4 - core index']
  #allocation1 [shape = 'u32[144,128]{1,0:T(1,128)}', space=vmem, size = 0x12000, scoped, tag = 'internal scratch']
  %s0 = inlined_call_operand.vmem [shape: f32[16,32], index: 0, kind: input, shape index: {}]
  %s1 = inlined_call_operand.vmem [shape: f32[32,32], index: 1, kind: input, shape index: {}]
  %s2 = inlined_call_operand.vmem [shape: f32[1,32], index: 2, kind: input, shape index: {}]
  %s3 = inlined_call_operand.vmem [shape: f32[16,32], index: 3, kind: input, shape index: {}]
  %s4 = inlined_call_operand.vmem [shape: f32[1,32], index: 4, kind: input, shape index: {}]
  %s5 = inlined_call_operand.vmem [shape: f32[1,32], index: 5, kind: input, shape index: {}]
  %s6 = inlined_call_operand.vmem [shape: f32[16,32], index: 6, kind: output, shape index: {}]
  %s7 = sld [smem:[#allocation0]]
  $region34: #{decoder_forward.19} parent=0
    _
  %s9 = ssub.s32 1, %s7
  %s10 = scalar_select 0, %s9, %s7
  // Predicated region
  $region2: #{decoder_forward.19} parent=0 // pred_check
    _
  $region3: #{decoder_forward.19} parent=0 // pred_check_branch
    %12 = sbr.rel (0) target = $region5
  $region4: #{decoder_forward.19} parent=0 // pred_region
    _
  $region5: #{decoder_forward.19} parent=0 // pred_fallthru
    _
  // Predicated region
  $region6: #{decoder_forward.19} parent=0 // pred_check
    _
  $region7: #{decoder_forward.19} parent=0 // pred_check_branch
    %14 = sbr.rel (0) target = $region9
  $region8: #{decoder_forward.19} parent=0 // pred_region
    _
  $region9: #{decoder_forward.19} parent=0 // pred_fallthru
    _
  // Predicated region
  $region10: #{decoder_forward.19} parent=0 // pred_check
    _
  $region11: #{decoder_forward.19} parent=0 // pred_check_branch
    %16 = sbr.rel (0) target = $region13
  $region12: #{decoder_forward.19} parent=0 // pred_region
    _
  $region13: #{decoder_forward.19} parent=0 // pred_fallthru
    _
  // Predicated region
  $region14: #{decoder_forward.19} parent=0 // pred_check
    _
  $region15: #{decoder_forward.19} parent=0 // pred_check_branch
    %18 = sbr.rel (0) target = $region17
  $region16: #{decoder_forward.19} parent=0 // pred_region
    _
  $region17: #{decoder_forward.19} parent=0 // pred_fallthru
    _
  // Predicated region
  $region18: #{decoder_forward.19} parent=0 // pred_check
    _
  $region19: #{decoder_forward.19} parent=0 // pred_check_branch
    %20 = sbr.rel (0) target = $region21
  $region20: #{decoder_forward.19} parent=0 // pred_region
    _
  $region21: #{decoder_forward.19} parent=0 // pred_fallthru
    _
  // Predicated region
  $region22: #{decoder_forward.19} parent=0 // pred_check
    _
  $region23: #{decoder_forward.19} parent=0 // pred_check_branch
    %22 = sbr.rel (0) target = $region25
  $region24: #{decoder_forward.19} parent=0 // pred_region
    _
  $region25: #{decoder_forward.19} parent=0 // pred_fallthru
    _
  %v24 = vld [vmem:[%s0] sm:$0xff]
  %v25 = vld [vmem:[%s0 + $0x8] sm:$0xff]
  %v26 = vpack.c.bf16 %v25, %v24
  %v27 = vld [vmem:[%s1] sm:$0xff]
  %v28 = vld [vmem:[%s1 + $0x8] sm:$0xff]
  %v29 = vld [vmem:[%s1 + $0x10] sm:$0xff]
  %v30 = vld [vmem:[%s1 + $0x18] sm:$0xff]
  %v31 = vpack.c.bf16 %v28, %v27
  %v32 = vpack.c.bf16 %v30, %v29
  %v33 = vld [vmem:[%s2] sm:$0x1]
  %v35 = vlaneseq
  %v36 = vshrl.u32 %v35, 7
  %v37 = vsub.s32 0, %v36
  %v38 = vrot.slane %v33, %v37
  %vm40 = vcmask 261120
  %v42 = vsel %vm40, %v26, 0
  %44 = vmatprep.subr.bf16.mxu0 0
  %45 = vmatpush1.bf16.msra.mxu0 %v31
  %46 = vmatprep.subr.bf16.mxu0 0
  %47 = vmatpush1.bf16.msra.mxu0 %v32
  %48 = vmatprep.subr.bf16.mxu0 0
  %49 = vmatpush1.bf16.msra.mxu0 0
  %50 = vmatprep.subr.bf16.mxu0 0
  %51 = vmatpush1.bf16.msra.mxu0 0
  %52 = vmatprep.subr.bf16.mxu0 0
  %53 = vmatpush1.bf16.msra.mxu0 0
  %54 = vmatprep.subr.bf16.mxu0 0
  %55 = vmatpush1.bf16.msra.mxu0 0
  %56 = vmatprep.subr.bf16.mxu0 0
  %57 = vmatpush1.bf16.msra.mxu0 0
  %58 = vmatprep.subr.bf16.mxu0 0
  %59 = vmatpush1.bf16.msra.mxu0 0
  %60 = vmatprep.subr.bf16.mxu0 0
  %61 = vmatpush1.bf16.msra.mxu0 0
  %62 = vmatprep.subr.bf16.mxu0 0
  %63 = vmatpush1.bf16.msra.mxu0 0
  %64 = vmatprep.subr.bf16.mxu0 0
  %65 = vmatpush1.bf16.msra.mxu0 0
  %66 = vmatprep.subr.bf16.mxu0 0
  %67 = vmatpush1.bf16.msra.mxu0 0
  %68 = vmatprep.subr.bf16.mxu0 0
  %69 = vmatpush1.bf16.msra.mxu0 0
  %70 = vmatprep.subr.bf16.mxu0 0
  %71 = vmatpush1.bf16.msra.mxu0 0
  %72 = vmatprep.subr.bf16.mxu0 0
  %73 = vmatpush1.bf16.msra.mxu0 0
  %74 = vmatprep.subr.bf16.mxu0 0
  %75 = vmatpush1.bf16.msra.mxu0 0
  %76 = vmatprep.mubr.bf16.mxu0 0
  %77 = vmatmul.mubr.bf16.gmra.mrb[0].mxu0 %v42
  %v78 = vpop.f32.mrb[0].mxu0
  %v79 = vadd.f32 %v38, %v78
  %v80 = vpop.f32.mrb[0].mxu0
  %v81 = vpop.f32.mrb[0].mxu0
  %v82 = vadd.f32 %v38, %v81
  %v83 = vpop.f32.mrb[0].mxu0
  %84 = vdwg.mxu0
  %v85 = vld [vmem:[%s3] sm:$0xff]
  %v86 = vld [vmem:[%s3 + $0x8] sm:$0xff]
  %v87 = vadd.f32 %v79, %v85
  %v88 = vadd.f32 %v82, %v86
  %v89 = vsel %vm40, %v87, 0.0
  %90 = vadd.xlane.f32.xlu0 %v89
  %v91 = vpop.xlane.xlu0 %90
  %v92 = vsel %vm40, %v88, 0.0
  %93 = vadd.xlane.f32.xlu0 %v92
  %v94 = vpop.xlane.xlu0 %93
  %v95 = vrcp.pop 32.0
  %v96 = vmul.f32 %v91, %v95
  %v97 = vmul.f32 %v94, %v95
  %v98 = vsub.f32 %v87, %v96
  %v99 = vsub.f32 %v88, %v97
  %v100 = vmul.f32 %v98, %v98
  %v101 = vmul.f32 %v99, %v99
  %v102 = vsel %vm40, %v100, 0.0
  %103 = vadd.xlane.f32.xlu0 %v102
  %v104 = vpop.xlane.xlu0 %103
  %v105 = vsel %vm40, %v101, 0.0
  %106 = vadd.xlane.f32.xlu0 %v105
  %v107 = vpop.xlane.xlu0 %106
  %v108 = vmul.f32 %v104, %v95
  %v109 = vmul.f32 %v107, %v95
  %v110 = vadd.f32 %v108, 1e-05
  %v111 = vadd.f32 %v109, 1e-05
  %v112 = vrsqrt.pop %v110
  %v113 = vrsqrt.pop %v111
  %v114 = vmul.f32 %v98, %v112
  %v115 = vmul.f32 %v99, %v113
  %v116 = vld [vmem:[%s4] sm:$0x1]
  %v118 = vlaneseq
  %v119 = vshrl.u32 %v118, 7
  %v120 = vsub.s32 0, %v119
  %v121 = vrot.slane %v116, %v120
  %v123 = vmul.f32 %v114, %v121
  %v124 = vmul.f32 %v115, %v121
  %v125 = vld [vmem:[%s5] sm:$0x1]
  %v127 = vlaneseq
  %v128 = vshrl.u32 %v127, 7
  %v129 = vsub.s32 0, %v128
  %v130 = vrot.slane %v125, %v129
  %v132 = vadd.f32 %v123, %v130
  %v133 = vadd.f32 %v124, %v130
  %134 = vst.msk [vmem:[%s6] sm:$0xff] %vm40, %v132
  %135 = vst.msk [vmem:[%s6 + $0x8] sm:$0xff] %vm40, %v133
  // Predicated region
  $region26: #{decoder_forward.19} parent=0 // pred_check
    _
  $region27: #{decoder_forward.19} parent=0 // pred_check_branch
    %137 = sbr.rel (0) target = $region29
  $region28: #{decoder_forward.19} parent=0 // pred_region
    _
  $region29: #{decoder_forward.19} parent=0 // pred_fallthru
    _
  // Predicated region
  $region30: #{decoder_forward.19} parent=0 // pred_check
    _
  $region31: #{decoder_forward.19} parent=0 // pred_check_branch
    %139 = sbr.rel (0) target = $region33
  $region32: #{decoder_forward.19} parent=0 // pred_region
    _
  $region33: #{decoder_forward.19} parent=0 // pred_fallthru
    _

// kernel: decoder_forward.18
$region0: #{decoder_forward.18}
  #allocation0 [shape = 'u32[]', space=smem, size = 0x4, offset = 0x4, fixed_abs, tag = 'smem constant byte address 0x4 - core index']
  #allocation1 [shape = 'u32[144,128]{1,0:T(1,128)}', space=vmem, size = 0x12000, scoped, tag = 'internal scratch']
  %s0 = inlined_call_operand.vmem [shape: f32[2,8,32], index: 0, kind: input, shape index: {}]
  %s1 = inlined_call_operand.vmem [shape: f32[2,8,32], index: 1, kind: input, shape index: {}]
  %s2 = inlined_call_operand.vmem [shape: f32[2,8,32], index: 2, kind: input, shape index: {}]
  %s3 = inlined_call_operand.vmem [shape: f32[8,8], index: 3, kind: input, shape index: {}]
  %s4 = inlined_call_operand.vmem [shape: f32[2,1,8], index: 4, kind: input, shape index: {}]
  %s5 = inlined_call_operand.vmem [shape: f32[2,8,32], index: 5, kind: output, shape index: {}]
  %s6 = sld [smem:[#allocation0]]
  $region53: #{decoder_forward.18} parent=0
    _
  %s8 = ssub.s32 1, %s6
  %s9 = scalar_select 0, %s8, %s6
  loop: start=0, step=1, limit=4
  $region2: #{decoder_forward.18} parent=0 // loop_pre_header
    _
  $region3: #{decoder_forward.18} parent=0 // loop_header
    %s11 = sphi 0, %s15
    %p12 = scmp.ge.s32.totalorder %s11, 4
    %s21 = sphi 0, %s23
    %s24 = sphi 0, %s21
    %s25 = sphi 0, %s24
    %s41 = sphi 0, %s25
    %s47 = sphi 0, %s49
    %s50 = sphi 0, %s47
    %s51 = sphi 0, %s50
    %s67 = sphi 0, %s51
    %s73 = sphi 0, %s75
    %s76 = sphi 0, %s73
    %s77 = sphi 0, %s76
    %s93 = sphi 0, %s77
    %s97 = sphi 0, %s97
    %s99 = sphi 0, %s97
    %s100 = sphi 0, %s99
    %s114 = sphi 0, %s100
    %s120 = sphi 0, %s122
    %s123 = sphi 0, %s120
    %s124 = sphi 0, %s123
    %s140 = sphi 0, %s124
    %s146 = sphi 0, %s148
    %s149 = sphi 0, %s146
    %s150 = sphi 0, %s149
    %s166 = sphi 0, %s150
  $region4: #{decoder_forward.18} parent=0 // loop_header_branch
    %14 = sbr.rel (%p12) target = $region8
  $region5: #{decoder_forward.18} parent=0 // loop_body
    %s16 = ssub.s32 %s11, 1
    %s17 = ssub.s32 %s11, 2
    %s18 = sadd.s32 %s11, 1
    %s19 = ssub.s32 %s11, %s18
    %p20 = scmp.eq.s32.totalorder %s19, 0
    %s22 = sadd.s32 %s21, 1
    %s23 = scalar_select %p20, %s21, %s22
    %p26 = pneg %p20
    %p27 = scmp.eq.s32.totalorder %s11, 1
    %p28 = por %p26, %p27
    %p29 = scmp.ne.s32.totalorder %s21, %s24
    %p30 = scmp.eq.s32.totalorder %s11, 0
    %p31 = por %p29, %p30
    %p32 = scmp.ne.s32.totalorder %s21, %s24
    %p33 = scmp.eq.s32.totalorder %s16, 1
    %p34 = por %p32, %p33
    %p35 = scmp.ne.s32.totalorder %s24, %s25
    %p36 = scmp.eq.s32.totalorder %s16, 0
    %p37 = por %p35, %p36
    %p38 = scmp.ne.s32.totalorder %s24, %s25
    %p39 = scmp.eq.s32.totalorder %s17, 1
    %p40 = por %p38, %p39
    %p42 = scmp.ne.s32.totalorder %s25, %s41
    %p43 = scmp.eq.s32.totalorder %s17, 0
    %p44 = por %p42, %p43
    %s45 = ssub.s32 %s11, %s18
    %p46 = scmp.eq.s32.totalorder %s45, 0
    %s48 = sadd.s32 %s47, 1
    %s49 = scalar_select %p46, %s47, %s48
    %p52 = pneg %p46
    %p53 = scmp.eq.s32.totalorder %s11, 1
    %p54 = por %p52, %p53
    %p55 = scmp.ne.s32.totalorder %s47, %s50
    %p56 = scmp.eq.s32.totalorder %s11, 0
    %p57 = por %p55, %p56
    %p58 = scmp.ne.s32.totalorder %s47, %s50
    %p59 = scmp.eq.s32.totalorder %s16, 1
    %p60 = por %p58, %p59
    %p61 = scmp.ne.s32.totalorder %s50, %s51
    %p62 = scmp.eq.s32.totalorder %s16, 0
    %p63 = por %p61, %p62
    %p64 = scmp.ne.s32.totalorder %s50, %s51
    %p65 = scmp.eq.s32.totalorder %s17, 1
    %p66 = por %p64, %p65
    %p68 = scmp.ne.s32.totalorder %s51, %s67
    %p69 = scmp.eq.s32.totalorder %s17, 0
    %p70 = por %p68, %p69
    %s71 = ssub.s32 %s11, %s18
    %p72 = scmp.eq.s32.totalorder %s71, 0
    %s74 = sadd.s32 %s73, 1
    %s75 = scalar_select %p72, %s73, %s74
    %p78 = pneg %p72
    %p79 = scmp.eq.s32.totalorder %s11, 1
    %p80 = por %p78, %p79
    %p81 = scmp.ne.s32.totalorder %s73, %s76
    %p82 = scmp.eq.s32.totalorder %s11, 0
    %p83 = por %p81, %p82
    %p84 = scmp.ne.s32.totalorder %s73, %s76
    %p85 = scmp.eq.s32.totalorder %s16, 1
    %p86 = por %p84, %p85
    %p87 = scmp.ne.s32.totalorder %s76, %s77
    %p88 = scmp.eq.s32.totalorder %s16, 0
    %p89 = por %p87, %p88
    %p90 = scmp.ne.s32.totalorder %s76, %s77
    %p91 = scmp.eq.s32.totalorder %s17, 1
    %p92 = por %p90, %p91
    %p94 = scmp.ne.s32.totalorder %s77, %s93
    %p95 = scmp.eq.s32.totalorder %s17, 0
    %p96 = por %p94, %p95
    %s98 = sadd.s32 %s97, 1
    %p101 = scmp.eq.s32.totalorder %s11, 1
    %p102 = scmp.ne.s32.totalorder %s97, %s99
    %p103 = scmp.eq.s32.totalorder %s11, 0
    %p104 = por %p102, %p103
    %p105 = scmp.ne.s32.totalorder %s97, %s99
    %p106 = scmp.eq.s32.totalorder %s16, 1
    %p107 = por %p105, %p106
    %p108 = scmp.ne.s32.totalorder %s99, %s100
    %p109 = scmp.eq.s32.totalorder %s16, 0
    %p110 = por %p108, %p109
    %p111 = scmp.ne.s32.totalorder %s99, %s100
    %p112 = scmp.eq.s32.totalorder %s17, 1
    %p113 = por %p111, %p112
    %p115 = scmp.ne.s32.totalorder %s100, %s114
    %p116 = scmp.eq.s32.totalorder %s17, 0
    %p117 = por %p115, %p116
    %s118 = ssub.s32 %s11, %s18
    %p119 = scmp.eq.s32.totalorder %s118, 0
    %s121 = sadd.s32 %s120, 1
    %s122 = scalar_select %p119, %s120, %s121
    %p125 = pneg %p119
    %p126 = scmp.eq.s32.totalorder %s11, 1
    %p127 = por %p125, %p126
    %p128 = scmp.ne.s32.totalorder %s120, %s123
    %p129 = scmp.eq.s32.totalorder %s11, 0
    %p130 = por %p128, %p129
    %p131 = scmp.ne.s32.totalorder %s120, %s123
    %p132 = scmp.eq.s32.totalorder %s16, 1
    %p133 = por %p131, %p132
    %p134 = scmp.ne.s32.totalorder %s123, %s124
    %p135 = scmp.eq.s32.totalorder %s16, 0
    %p136 = por %p134, %p135
    %p137 = scmp.ne.s32.totalorder %s123, %s124
    %p138 = scmp.eq.s32.totalorder %s17, 1
    %p139 = por %p137, %p138
    %p141 = scmp.ne.s32.totalorder %s124, %s140
    %p142 = scmp.eq.s32.totalorder %s17, 0
    %p143 = por %p141, %p142
    %s144 = ssub.s32 %s11, %s18
    %p145 = scmp.eq.s32.totalorder %s144, 0
    %s147 = sadd.s32 %s146, 1
    %s148 = scalar_select %p145, %s146, %s147
    %p151 = pneg %p145
    %p152 = scmp.eq.s32.totalorder %s11, 1
    %p153 = por %p151, %p152
    %p154 = scmp.ne.s32.totalorder %s146, %s149
    %p155 = scmp.eq.s32.totalorder %s11, 0
    %p156 = por %p154, %p155
    %p157 = scmp.ne.s32.totalorder %s146, %s149
    %p158 = scmp.eq.s32.totalorder %s16, 1
    %p159 = por %p157, %p158
    %p160 = scmp.ne.s32.totalorder %s149, %s150
    %p161 = scmp.eq.s32.totalorder %s16, 0
    %p162 = por %p160, %p161
    %p163 = scmp.ne.s32.totalorder %s149, %s150
    %p164 = scmp.eq.s32.totalorder %s17, 1
    %p165 = por %p163, %p164
    %p167 = scmp.ne.s32.totalorder %s150, %s166
    %p168 = scmp.eq.s32.totalorder %s17, 0
    %p169 = por %p167, %p168
    %p170 = scmp.le.s32.totalorder 1, %s11
    %p171 = scmp.lt.s32.totalorder %s11, 3
    %p172 = pnand %p170, %p171
    %p173 = pneg %p172
    // Predicated region
    $region9: #{decoder_forward.18} parent=5 // pred_check
      _
    $region10: #{decoder_forward.18} parent=5 // pred_check_branch
      %175 = sbr.rel (%p172) target = $region12
    $region11: #{decoder_forward.18} parent=5 // pred_region
      %s176 = ssub.s32 %s11, 1
      // Predicated region
      $region13: #{decoder_forward.18} parent=11 // pred_check
        %p177 = pneg %p110
      $region14: #{decoder_forward.18} parent=11 // pred_check_branch
        %179 = sbr.rel (%p177) target = $region16
      $region15: #{decoder_forward.18} parent=11 // pred_region
        _
      $region16: #{decoder_forward.18} parent=11 // pred_fallthru
        _
    $region12: #{decoder_forward.18} parent=5 // pred_fallthru
      _
    %p180 = scmp.lt.s32.totalorder %s11, 2
    // Predicated region
    $region17: #{decoder_forward.18} parent=5 // pred_check
      %p181 = pneg %p180
    $region18: #{decoder_forward.18} parent=5 // pred_check_branch
      %183 = sbr.rel (%p181) target = $region20
    $region19: #{decoder_forward.18} parent=5 // pred_region
      // Predicated region
      $region21: #{decoder_forward.18} parent=19 // pred_check
        %p184 = pneg %p31
      $region22: #{decoder_forward.18} parent=19 // pred_check_branch
        %186 = sbr.rel (%p184) target = $region24
      $region23: #{decoder_forward.18} parent=19 // pred_region
        %p187 = scmp.lt.s32.totalorder %s11, 1
        %s188 = scalar_select %p187, %s11, 1
        %s189 = smul.addr %s188, 8
        %s190 = scalar_lea.vmem %s0, %s189
      $region24: #{decoder_forward.18} parent=19 // pred_fallthru
        _
      // Predicated region
      $region25: #{decoder_forward.18} parent=19 // pred_check
        %p191 = pneg %p57
      $region26: #{decoder_forward.18} parent=19 // pred_check_branch
        %193 = sbr.rel (%p191) target = $region28
      $region27: #{decoder_forward.18} parent=19 // pred_region
        %p194 = scmp.lt.s32.totalorder %s11, 1
        %s195 = scalar_select %p194, %s11, 1
        %s196 = smul.addr %s195, 8
        %s197 = scalar_lea.vmem %s1, %s196
      $region28: #{decoder_forward.18} parent=19 // pred_fallthru
        _
      // Predicated region
      $region29: #{decoder_forward.18} parent=19 // pred_check
        %p198 = pneg %p83
      $region30: #{decoder_forward.18} parent=19 // pred_check_branch
        %200 = sbr.rel (%p198) target = $region32
      $region31: #{decoder_forward.18} parent=19 // pred_region
        %p201 = scmp.lt.s32.totalorder %s11, 1
        %s202 = scalar_select %p201, %s11, 1
        %s203 = smul.addr %s202, 8
        %s204 = scalar_lea.vmem %s2, %s203
      $region32: #{decoder_forward.18} parent=19 // pred_fallthru
        _
      // Predicated region
      $region33: #{decoder_forward.18} parent=19 // pred_check
        %p205 = pneg %p130
      $region34: #{decoder_forward.18} parent=19 // pred_check_branch
        %207 = sbr.rel (%p205) target = $region36
      $region35: #{decoder_forward.18} parent=19 // pred_region
        %p208 = scmp.lt.s32.totalorder %s11, 1
        %s209 = scalar_select %p208, %s11, 1
        %s210 = scalar_lea.vmem %s4, %s209
      $region36: #{decoder_forward.18} parent=19 // pred_fallthru
        _
    $region20: #{decoder_forward.18} parent=5 // pred_fallthru
      _
    %p211 = scmp.le.s32.totalorder 1, %s11
    %p212 = scmp.lt.s32.totalorder %s11, 3
    %p213 = pnand %p211, %p212
    %p214 = pneg %p213
    // Predicated region
    $region37: #{decoder_forward.18} parent=5 // pred_check
      _
    $region38: #{decoder_forward.18} parent=5 // pred_check_branch
      %216 = sbr.rel (%p213) target = $region40
    $region39: #{decoder_forward.18} parent=5 // pred_region
      %s217 = ssub.s32 %s11, 1
      %p218 = scmp.lt.s32.totalorder %s16, 1
      %s219 = scalar_select %p218, %s16, 1
      %s220 = smul.addr %s219, 8
      %s221 = scalar_lea.vmem %s0, %s220
      %p222 = pneg %p37
      %p223 = pneg %p34
      %p224 = scmp.lt.s32.totalorder %s16, 1
      %s225 = scalar_select %p224, %s16, 1
      %s226 = smul.addr %s225, 8
      %s227 = scalar_lea.vmem %s1, %s226
      %p228 = pneg %p63
      %p229 = pneg %p60
      %p230 = scmp.lt.s32.totalorder %s16, 1
      %s231 = scalar_select %p230, %s16, 1
      %s232 = smul.addr %s231, 8
      %s233 = scalar_lea.vmem %s2, %s232
      %p234 = pneg %p89
      %p235 = pneg %p86
      %p236 = pneg %p110
      %p237 = pneg %p107
      %p238 = scmp.lt.s32.totalorder %s16, 1
      %s239 = scalar_select %p238, %s16, 1
      %s240 = scalar_lea.vmem %s4, %s239
      %p241 = pneg %p136
      %p242 = pneg %p133
      %p243 = pneg %p162
      %p244 = pneg %p159
      %p245 = scmp.lt.s32.totalorder %s16, 1
      %s246 = scalar_select %p245, %s16, 1
      %s247 = smul.addr %s246, 8
      %s248 = scalar_lea.vmem %s5, %s247
      %p249 = scmp.lt.s32.totalorder %s16, 1
      %s250 = scalar_select %p249, %s16, 1
      %s251 = smul.addr %s250, 8
      %s252 = scalar_lea.vmem %s0, %s251
      %p253 = scmp.lt.s32.totalorder %s16, 1
      %s254 = scalar_select %p253, %s16, 1
      %s255 = smul.addr %s254, 8
      %s256 = scalar_lea.vmem %s1, %s255
      %p257 = scmp.lt.s32.totalorder %s16, 1
      %s258 = scalar_select %p257, %s16, 1
      %s259 = smul.addr %s258, 8
      %s260 = scalar_lea.vmem %s2, %s259
      %p261 = scmp.lt.s32.totalorder %s16, 1
      %s262 = scalar_select %p261, %s16, 1
      %s263 = scalar_lea.vmem %s4, %s262
      %p264 = scmp.lt.s32.totalorder %s16, 1
      %s265 = scalar_select %p264, %s16, 1
      %s266 = smul.addr %s265, 8
      %s267 = scalar_lea.vmem %s5, %s266
      %v269 = vld [vmem:[%s252] sm:$0xff]
      %v270 = vld [vmem:[%s256] sm:$0xff]
      %v271 = vld [vmem:[%s260] sm:$0xff]
      %v272 = vld [vmem:[%s3] sm:$0xff]
      %v273 = vld [vmem:[%s263] sm:$0x1]
      %v275 = vlaneseq
      %v276 = vshrl.u32 %v275, 7
      %v277 = vsub.s32 0, %v276
      %v278 = vrot.slane %v273, %v277
      %v280 = vadd.f32 %v272, %v278
      %v281 = vpack.c.bf16 %v269, %v269
      %v282 = vpack.c.bf16 %v270, %v270
      %v283 = vpack.c.bf16 %v271, %v271
      %vm284 = vcmask 64512
      %v286 = vsel %vm284, %v281, 0
      %v289 = vsel %vm284, %v282, 0
      %291 = vmatprep.subr.bf16.mxu0 0
      %292 = vmatpush1.bf16.xpose.msra.mxu0 %v289
      %293 = vmatprep.subr.bf16.mxu0 0
      %294 = vmatpush1.bf16.xpose.msra.mxu0 0
      %295 = vmatprep.subr.bf16.mxu0 0
      %296 = vmatpush1.bf16.xpose.msra.mxu0 0
      %297 = vmatprep.subr.bf16.mxu0 0
      %298 = vmatpush1.bf16.xpose.msra.mxu0 0
      %299 = vmatprep.subr.bf16.mxu0 0
      %300 = vmatpush1.bf16.xpose.msra.mxu0 0
      %301 = vmatprep.subr.bf16.mxu0 0
      %302 = vmatpush1.bf16.xpose.msra.mxu0 0
      %303 = vmatprep.subr.bf16.mxu0 0
      %304 = vmatpush1.bf16.xpose.msra.mxu0 0
      %305 = vmatprep.subr.bf16.mxu0 0
      %306 = vmatpush1.bf16.xpose.msra.mxu0 0
      %307 = vmatprep.subr.bf16.mxu0 0
      %308 = vmatpush1.bf16.xpose.msra.mxu0 0
      %309 = vmatprep.subr.bf16.mxu0 0
      %310 = vmatpush1.bf16.xpose.msra.mxu0 0
      %311 = vmatprep.subr.bf16.mxu0 0
      %312 = vmatpush1.bf16.xpose.msra.mxu0 0
      %313 = vmatprep.subr.bf16.mxu0 0
      %314 = vmatpush1.bf16.xpose.msra.mxu0 0
      %315 = vmatprep.subr.bf16.mxu0 0
      %316 = vmatpush1.bf16.xpose.msra.mxu0 0
      %317 = vmatprep.subr.bf16.mxu0 0
      %318 = vmatpush1.bf16.xpose.msra.mxu0 0
      %319 = vmatprep.subr.bf16.mxu0 0
      %320 = vmatpush1.bf16.xpose.msra.mxu0 0
      %321 = vmatprep.subr.bf16.mxu0 0
      %322 = vmatpush1.bf16.xpose.msra.mxu0 0
      %323 = vmatprep.mubr.bf16.mxu0 0
      %324 = vmatmul.mubr.bf16.gmra.mrb[0].mxu0 %v286
      %v325 = vpop.f32.mrb[0].mxu0
      %v326 = vadd.f32 0.0, %v325
      %v327 = vpop.f32.mrb[0].mxu0
      %v328 = vpop.f32.mrb[0].mxu0
      %v329 = vpop.f32.mrb[0].mxu0
      %330 = vdwg.mxu0
      %v331 = vmul.f32 %v326, 0.35355338
      %v332 = vadd.f32 %v331, %v280
      %v333 = vsel %vm284, %v332, -inf
      %334 = vmax.xlane.f32.xlu0 %v333
      %v335 = vpop.xlane.xlu0 %334
      %v336 = vsub.f32 %v332, %v335
      %v337 = vmul.f32 %v336, 1.442695
      %v338 = vpow.pop %v337
      %v339 = vsel %vm284, %v338, 0.0
      %340 = vadd.xlane.f32.xlu0 %v339
      %v341 = vpop.xlane.xlu0 %340
      %v342 = vrcp.pop %v341
      %v343 = vmul.f32 %v338, %v342
      %v344 = vpack.c.bf16 %v343, %v343
      %v346 = vsel %vm284, %v344, 0
      %vm348 = vcmask 1043456
      %v350 = vsel %vm348, %v283, 0
      %352 = vmatprep.subr.bf16.mxu0 0
      %353 = vmatpush1.bf16.msra.mxu0 %v350
      %354 = vmatprep.subr.bf16.mxu0 0
      %355 = vmatpush1.bf16.msra.mxu0 0
      %356 = vmatprep.subr.bf16.mxu0 0
      %357 = vmatpush1.bf16.msra.mxu0 0
      %358 = vmatprep.subr.bf16.mxu0 0
      %359 = vmatpush1.bf16.msra.mxu0 0
      %360 = vmatprep.subr.bf16.mxu0 0
      %361 = vmatpush1.bf16.msra.mxu0 0
      %362 = vmatprep.subr.bf16.mxu0 0
      %363 = vmatpush1.bf16.msra.mxu0 0
      %364 = vmatprep.subr.bf16.mxu0 0
      %365 = vmatpush1.bf16.msra.mxu0 0
      %366 = vmatprep.subr.bf16.mxu0 0
      %367 = vmatpush1.bf16.msra.mxu0 0
      %368 = vmatprep.subr.bf16.mxu0 0
      %369 = vmatpush1.bf16.msra.mxu0 0
      %370 = vmatprep.subr.bf16.mxu0 0
      %371 = vmatpush1.bf16.msra.mxu0 0
      %372 = vmatprep.subr.bf16.mxu0 0
      %373 = vmatpush1.bf16.msra.mxu0 0
      %374 = vmatprep.subr.bf16.mxu0 0
      %375 = vmatpush1.bf16.msra.mxu0 0
      %376 = vmatprep.subr.bf16.mxu0 0
      %377 = vmatpush1.bf16.msra.mxu0 0
      %378 = vmatprep.subr.bf16.mxu0 0
      %379 = vmatpush1.bf16.msra.mxu0 0
      %380 = vmatprep.subr.bf16.mxu0 0
      %381 = vmatpush1.bf16.msra.mxu0 0
      %382 = vmatprep.subr.bf16.mxu0 0
      %383 = vmatpush1.bf16.msra.mxu0 0
      %384 = vmatprep.mubr.bf16.mxu0 0
      %385 = vmatmul.mubr.bf16.gmra.mrb[0].mxu0 %v346
      %v386 = vpop.f32.mrb[0].mxu0
      %v387 = vadd.f32 0.0, %v386
      %v388 = vpop.f32.mrb[0].mxu0
      %v389 = vpop.f32.mrb[0].mxu0
      %v390 = vpop.f32.mrb[0].mxu0
      %391 = vdwg.mxu0
      %393 = vrot.lane.b32.xlu0 %v281, 120
      %v394 = vpop.permute.xlu0 %393
      %396 = vrot.lane.b32.xlu0 %v282, 120
      %v397 = vpop.permute.xlu0 %396
      %v399 = vsel %vm284, %v394, 0
      %v402 = vsel %vm284, %v397, 0
      %404 = vmatprep.subr.bf16.mxu0 0
      %405 = vmatpush1.bf16.xpose.msra.mxu0 %v402
      %406 = vmatprep.subr.bf16.mxu0 0
      %407 = vmatpush1.bf16.xpose.msra.mxu0 0
      %408 = vmatprep.subr.bf16.mxu0 0
      %409 = vmatpush1.bf16.xpose.msra.mxu0 0
      %410 = vmatprep.subr.bf16.mxu0 0
      %411 = vmatpush1.bf16.xpose.msra.mxu0 0
      %412 = vmatprep.subr.bf16.mxu0 0
      %413 = vmatpush1.bf16.xpose.msra.mxu0 0
      %414 = vmatprep.subr.bf16.mxu0 0
      %415 = vmatpush1.bf16.xpose.msra.mxu0 0
      %416 = vmatprep.subr.bf16.mxu0 0
      %417 = vmatpush1.bf16.xpose.msra.mxu0 0
      %418 = vmatprep.subr.bf16.mxu0 0
      %419 = vmatpush1.bf16.xpose.msra.mxu0 0
      %420 = vmatprep.subr.bf16.mxu0 0
      %421 = vmatpush1.bf16.xpose.msra.mxu0 0
      %422 = vmatprep.subr.bf16.mxu0 0
      %423 = vmatpush1.bf16.xpose.msra.mxu0 0
      %424 = vmatprep.subr.bf16.mxu0 0
      %425 = vmatpush1.bf16.xpose.msra.mxu0 0
      %426 = vmatprep.subr.bf16.mxu0 0
      %427 = vmatpush1.bf16.xpose.msra.mxu0 0
      %428 = vmatprep.subr.bf16.mxu0 0
      %429 = vmatpush1.bf16.xpose.msra.mxu0 0
      %430 = vmatprep.subr.bf16.mxu0 0
      %431 = vmatpush1.bf16.xpose.msra.mxu0 0
      %432 = vmatprep.subr.bf16.mxu0 0
      %433 = vmatpush1.bf16.xpose.msra.mxu0 0
      %434 = vmatprep.subr.bf16.mxu0 0
      %435 = vmatpush1.bf16.xpose.msra.mxu0 0
      %436 = vmatprep.mubr.bf16.mxu0 0
      %437 = vmatmul.mubr.bf16.gmra.mrb[0].mxu0 %v399
      %v438 = vpop.f32.mrb[0].mxu0
      %v439 = vadd.f32 0.0, %v438
      %v440 = vpop.f32.mrb[0].mxu0
      %v441 = vpop.f32.mrb[0].mxu0
      %v442 = vpop.f32.mrb[0].mxu0
      %443 = vdwg.mxu0
      %v444 = vmul.f32 %v439, 0.35355338
      %v445 = vadd.f32 %v444, %v280
      %v446 = vsel %vm284, %v445, -inf
      %447 = vmax.xlane.f32.xlu0 %v446
      %v448 = vpop.xlane.xlu0 %447
      %v449 = vsub.f32 %v445, %v448
      %v450 = vmul.f32 %v449, 1.442695
      %v451 = vpow.pop %v450
      %v452 = vsel %vm284, %v451, 0.0
      %453 = vadd.xlane.f32.xlu0 %v452
      %v454 = vpop.xlane.xlu0 %453
      %v455 = vrcp.pop %v454
      %v456 = vmul.f32 %v451, %v455
      %v457 = vpack.c.bf16 %v456, %v456
      %459 = vrot.lane.b32.xlu0 %v283, 120
      %v460 = vpop.permute.xlu0 %459
      %v462 = vsel %vm284, %v457, 0
      %v465 = vsel %vm348, %v460, 0
      %467 = vmatprep.subr.bf16.mxu0 0
      %468 = vmatpush1.bf16.msra.mxu0 %v465
      %469 = vmatprep.subr.bf16.mxu0 0
      %470 = vmatpush1.bf16.msra.mxu0 0
      %471 = vmatprep.subr.bf16.mxu0 0
      %472 = vmatpush1.bf16.msra.mxu0 0
      %473 = vmatprep.subr.bf16.mxu0 0
      %474 = vmatpush1.bf16.msra.mxu0 0
      %475 = vmatprep.subr.bf16.mxu0 0
      %476 = vmatpush1.bf16.msra.mxu0 0
      %477 = vmatprep.subr.bf16.mxu0 0
      %478 = vmatpush1.bf16.msra.mxu0 0
      %479 = vmatprep.subr.bf16.mxu0 0
      %480 = vmatpush1.bf16.msra.mxu0 0
      %481 = vmatprep.subr.bf16.mxu0 0
      %482 = vmatpush1.bf16.msra.mxu0 0
      %483 = vmatprep.subr.bf16.mxu0 0
      %484 = vmatpush1.bf16.msra.mxu0 0
      %485 = vmatprep.subr.bf16.mxu0 0
      %486 = vmatpush1.bf16.msra.mxu0 0
      %487 = vmatprep.subr.bf16.mxu0 0
      %488 = vmatpush1.bf16.msra.mxu0 0
      %489 = vmatprep.subr.bf16.mxu0 0
      %490 = vmatpush1.bf16.msra.mxu0 0
      %491 = vmatprep.subr.bf16.mxu0 0
      %492 = vmatpush1.bf16.msra.mxu0 0
      %493 = vmatprep.subr.bf16.mxu0 0
      %494 = vmatpush1.bf16.msra.mxu0 0
      %495 = vmatprep.subr.bf16.mxu0 0
      %496 = vmatpush1.bf16.msra.mxu0 0
      %497 = vmatprep.subr.bf16.mxu0 0
      %498 = vmatpush1.bf16.msra.mxu0 0
      %499 = vmatprep.mubr.bf16.mxu0 0
      %500 = vmatmul.mubr.bf16.gmra.mrb[0].mxu0 %v462
      %v501 = vpop.f32.mrb[0].mxu0
      %v502 = vadd.f32 0.0, %v501
      %v503 = vpop.f32.mrb[0].mxu0
      %v504 = vpop.f32.mrb[0].mxu0
      %v505 = vpop.f32.mrb[0].mxu0
      %506 = vdwg.mxu0
      %507 = vrot.lane.b32.xlu0 %v281, 112
      %v508 = vpop.permute.xlu0 %507
      %509 = vrot.lane.b32.xlu0 %v282, 112
      %v510 = vpop.permute.xlu0 %509
      %v512 = vsel %vm284, %v508, 0
      %v515 = vsel %vm284, %v510, 0
      %517 = vmatprep.subr.bf16.mxu0 0
      %518 = vmatpush1.bf16.xpose.msra.mxu0 %v515
      %519 = vmatprep.subr.bf16.mxu0 0
      %520 = vmatpush1.bf16.xpose.msra.mxu0 0
      %521 = vmatprep.subr.bf16.mxu0 0
      %522 = vmatpush1.bf16.xpose.msra.mxu0 0
      %523 = vmatprep.subr.bf16.mxu0 0
      %524 = vmatpush1.bf16.xpose.msra.mxu0 0
      %525 = vmatprep.subr.bf16.mxu0 0
      %526 = vmatpush1.bf16.xpose.msra.mxu0 0
      %527 = vmatprep.subr.bf16.mxu0 0
      %528 = vmatpush1.bf16.xpose.msra.mxu0 0
      %529 = vmatprep.subr.bf16.mxu0 0
      %530 = vmatpush1.bf16.xpose.msra.mxu0 0
      %531 = vmatprep.subr.bf16.mxu0 0
      %532 = vmatpush1.bf16.xpose.msra.mxu0 0
      %533 = vmatprep.subr.bf16.mxu0 0
      %534 = vmatpush1.bf16.xpose.msra.mxu0 0
      %535 = vmatprep.subr.bf16.mxu0 0
      %536 = vmatpush1.bf16.xpose.msra.mxu0 0
      %537 = vmatprep.subr.bf16.mxu0 0
      %538 = vmatpush1.bf16.xpose.msra.mxu0 0
      %539 = vmatprep.subr.bf16.mxu0 0
      %540 = vmatpush1.bf16.xpose.msra.mxu0 0
      %541 = vmatprep.subr.bf16.mxu0 0
      %542 = vmatpush1.bf16.xpose.msra.mxu0 0
      %543 = vmatprep.subr.bf16.mxu0 0
      %544 = vmatpush1.bf16.xpose.msra.mxu0 0
      %545 = vmatprep.subr.bf16.mxu0 0
      %546 = vmatpush1.bf16.xpose.msra.mxu0 0
      %547 = vmatprep.subr.bf16.mxu0 0
      %548 = vmatpush1.bf16.xpose.msra.mxu0 0
      %549 = vmatprep.mubr.bf16.mxu0 0
      %550 = vmatmul.mubr.bf16.gmra.mrb[0].mxu0 %v512
      %v551 = vpop.f32.mrb[0].mxu0
      %v552 = vadd.f32 0.0, %v551
      %v553 = vpop.f32.mrb[0].mxu0
      %v554 = vpop.f32.mrb[0].mxu0
      %v555 = vpop.f32.mrb[0].mxu0
      %556 = vdwg.mxu0
      %v557 = vmul.f32 %v552, 0.35355338
      %v558 = vadd.f32 %v557, %v280
      %v559 = vsel %vm284, %v558, -inf
      %560 = vmax.xlane.f32.xlu0 %v559
      %v561 = vpop.xlane.xlu0 %560
      %v562 = vsub.f32 %v558, %v561
      %v563 = vmul.f32 %v562, 1.442695
      %v564 = vpow.pop %v563
      %v565 = vsel %vm284, %v564, 0.0
      %566 = vadd.xlane.f32.xlu0 %v565
      %v567 = vpop.xlane.xlu0 %566
      %v568 = vrcp.pop %v567
      %v569 = vmul.f32 %v564, %v568
      %v570 = vpack.c.bf16 %v569, %v569
      %571 = vrot.lane.b32.xlu0 %v283, 112
      %v572 = vpop.permute.xlu0 %571
      %v574 = vsel %vm284, %v570, 0
      %v577 = vsel %vm348, %v572, 0
      %579 = vmatprep.subr.bf16.mxu0 0
      %580 = vmatpush1.bf16.msra.mxu0 %v577
      %581 = vmatprep.subr.bf16.mxu0 0
      %582 = vmatpush1.bf16.msra.mxu0 0
      %583 = vmatprep.subr.bf16.mxu0 0
      %584 = vmatpush1.bf16.msra.mxu0 0
      %585 = vmatprep.subr.bf16.mxu0 0
      %586 = vmatpush1.bf16.msra.mxu0 0
      %587 = vmatprep.subr.bf16.mxu0 0
      %588 = vmatpush1.bf16.msra.mxu0 0
      %589 = vmatprep.subr.bf16.mxu0 0
      %590 = vmatpush1.bf16.msra.mxu0 0
      %591 = vmatprep.subr.bf16.mxu0 0
      %592 = vmatpush1.bf16.msra.mxu0 0
      %593 = vmatprep.subr.bf16.mxu0 0
      %594 = vmatpush1.bf16.msra.mxu0 0
      %595 = vmatprep.subr.bf16.mxu0 0
      %596 = vmatpush1.bf16.msra.mxu0 0
      %597 = vmatprep.subr.bf16.mxu0 0
      %598 = vmatpush1.bf16.msra.mxu0 0
      %599 = vmatprep.subr.bf16.mxu0 0
      %600 = vmatpush1.bf16.msra.mxu0 0
      %601 = vmatprep.subr.bf16.mxu0 0
      %602 = vmatpush1.bf16.msra.mxu0 0
      %603 = vmatprep.subr.bf16.mxu0 0
      %604 = vmatpush1.bf16.msra.mxu0 0
      %605 = vmatprep.subr.bf16.mxu0 0
      %606 = vmatpush1.bf16.msra.mxu0 0
      %607 = vmatprep.subr.bf16.mxu0 0
      %608 = vmatpush1.bf16.msra.mxu0 0
      %609 = vmatprep.subr.bf16.mxu0 0
      %610 = vmatpush1.bf16.msra.mxu0 0
      %611 = vmatprep.mubr.bf16.mxu0 0
      %612 = vmatmul.mubr.bf16.gmra.mrb[0].mxu0 %v574
      %v613 = vpop.f32.mrb[0].mxu0
      %v614 = vadd.f32 0.0, %v613
      %v615 = vpop.f32.mrb[0].mxu0
      %v616 = vpop.f32.mrb[0].mxu0
      %v617 = vpop.f32.mrb[0].mxu0
      %618 = vdwg.mxu0
      %619 = vrot.lane.b32.xlu0 %v281, 104
      %v620 = vpop.permute.xlu0 %619
      %621 = vrot.lane.b32.xlu0 %v282, 104
      %v622 = vpop.permute.xlu0 %621
      %v624 = vsel %vm284, %v620, 0
      %v627 = vsel %vm284, %v622, 0
      %629 = vmatprep.subr.bf16.mxu0 0
      %630 = vmatpush1.bf16.xpose.msra.mxu0 %v627
      %631 = vmatprep.subr.bf16.mxu0 0
      %632 = vmatpush1.bf16.xpose.msra.mxu0 0
      %633 = vmatprep.subr.bf16.mxu0 0
      %634 = vmatpush1.bf16.xpose.msra.mxu0 0
      %635 = vmatprep.subr.bf16.mxu0 0
      %636 = vmatpush1.bf16.xpose.msra.mxu0 0
      %637 = vmatprep.subr.bf16.mxu0 0
      %638 = vmatpush1.bf16.xpose.msra.mxu0 0
      %639 = vmatprep.subr.bf16.mxu0 0
      %640 = vmatpush1.bf16.xpose.msra.mxu0 0
      %641 = vmatprep.subr.bf16.mxu0 0
      %642 = vmatpush1.bf16.xpose.msra.mxu0 0
      %643 = vmatprep.subr.bf16.mxu0 0
      %644 = vmatpush1.bf16.xpose.msra.mxu0 0
      %645 = vmatprep.subr.bf16.mxu0 0
      %646 = vmatpush1.bf16.xpose.msra.mxu0 0
      %647 = vmatprep.subr.bf16.mxu0 0
      %648 = vmatpush1.bf16.xpose.msra.mxu0 0
      %649 = vmatprep.subr.bf16.mxu0 0
      %650 = vmatpush1.bf16.xpose.msra.mxu0 0
      %651 = vmatprep.subr.bf16.mxu0 0
      %652 = vmatpush1.bf16.xpose.msra.mxu0 0
      %653 = vmatprep.subr.bf16.mxu0 0
      %654 = vmatpush1.bf16.xpose.msra.mxu0 0
      %655 = vmatprep.subr.bf16.mxu0 0
      %656 = vmatpush1.bf16.xpose.msra.mxu0 0
      %657 = vmatprep.subr.bf16.mxu0 0
      %658 = vmatpush1.bf16.xpose.msra.mxu0 0
      %659 = vmatprep.subr.bf16.mxu0 0
      %660 = vmatpush1.bf16.xpose.msra.mxu0 0
      %661 = vmatprep.mubr.bf16.mxu0 0
      %662 = vmatmul.mubr.bf16.gmra.mrb[0].mxu0 %v624
      %v663 = vpop.f32.mrb[0].mxu0
      %v664 = vadd.f32 0.0, %v663
      %v665 = vpop.f32.mrb[0].mxu0
      %v666 = vpop.f32.mrb[0].mxu0
      %v667 = vpop.f32.mrb[0].mxu0
      %668 = vdwg.mxu0
      %v669 = vmul.f32 %v664, 0.35355338
      %v670 = vadd.f32 %v669, %v280
      %v671 = vsel %vm284, %v670, -inf
      %672 = vmax.xlane.f32.xlu0 %v671
      %v673 = vpop.xlane.xlu0 %672
      %v674 = vsub.f32 %v670, %v673
      %v675 = vmul.f32 %v674, 1.442695
      %v676 = vpow.pop %v675
      %v677 = vsel %vm284, %v676, 0.0
      %678 = vadd.xlane.f32.xlu0 %v677
      %v679 = vpop.xlane.xlu0 %678
      %v680 = vrcp.pop %v679
      %v681 = vmul.f32 %v676, %v680
      %v682 = vpack.c.bf16 %v681, %v681
      %683 = vrot.lane.b32.xlu0 %v283, 104
      %v684 = vpop.permute.xlu0 %683
      %v686 = vsel %vm284, %v682, 0
      %v689 = vsel %vm348, %v684, 0
      %691 = vmatprep.subr.bf16.mxu0 0
      %692 = vmatpush1.bf16.msra.mxu0 %v689
      %693 = vmatprep.subr.bf16.mxu0 0
      %694 = vmatpush1.bf16.msra.mxu0 0
      %695 = vmatprep.subr.bf16.mxu0 0
      %696 = vmatpush1.bf16.msra.mxu0 0
      %697 = vmatprep.subr.bf16.mxu0 0
      %698 = vmatpush1.bf16.msra.mxu0 0
      %699 = vmatprep.subr.bf16.mxu0 0
      %700 = vmatpush1.bf16.msra.mxu0 0
      %701 = vmatprep.subr.bf16.mxu0 0
      %702 = vmatpush1.bf16.msra.mxu0 0
      %703 = vmatprep.subr.bf16.mxu0 0
      %704 = vmatpush1.bf16.msra.mxu0 0
      %705 = vmatprep.subr.bf16.mxu0 0
      %706 = vmatpush1.bf16.msra.mxu0 0
      %707 = vmatprep.subr.bf16.mxu0 0
      %708 = vmatpush1.bf16.msra.mxu0 0
      %709 = vmatprep.subr.bf16.mxu0 0
      %710 = vmatpush1.bf16.msra.mxu0 0
      %711 = vmatprep.subr.bf16.mxu0 0
      %712 = vmatpush1.bf16.msra.mxu0 0
      %713 = vmatprep.subr.bf16.mxu0 0
      %714 = vmatpush1.bf16.msra.mxu0 0
      %715 = vmatprep.subr.bf16.mxu0 0
      %716 = vmatpush1.bf16.msra.mxu0 0
      %717 = vmatprep.subr.bf16.mxu0 0
      %718 = vmatpush1.bf16.msra.mxu0 0
      %719 = vmatprep.subr.bf16.mxu0 0
      %720 = vmatpush1.bf16.msra.mxu0 0
      %721 = vmatprep.subr.bf16.mxu0 0
      %722 = vmatpush1.bf16.msra.mxu0 0
      %723 = vmatprep.mubr.bf16.mxu0 0
      %724 = vmatmul.mubr.bf16.gmra.mrb[0].mxu0 %v686
      %v725 = vpop.f32.mrb[0].mxu0
      %v726 = vadd.f32 0.0, %v725
      %v727 = vpop.f32.mrb[0].mxu0
      %v728 = vpop.f32.mrb[0].mxu0
      %v729 = vpop.f32.mrb[0].mxu0
      %730 = vdwg.mxu0
      %732 = vrot.lane.b32.xlu0 %v502, 8
      %v733 = vpop.permute.xlu0 %732
      %736 = vrot.lane.b32.xlu0 %v614, 16
      %v737 = vpop.permute.xlu0 %736
      %740 = vrot.lane.b32.xlu0 %v726, 24
      %v741 = vpop.permute.xlu0 %740
      %v743 = vsel %vm284, %v387, %v733
      %vm744 = vcmask 130048
      %v745 = vsel %vm744, %v743, %v737
      %vm746 = vcmask 195584
      %v747 = vsel %vm746, %v745, %v741
      %vm748 = vcmask 261120
      %749 = vst.msk [vmem:[%s267] sm:$0xff] %vm748, %v747
      %p750 = scmp.lt.s32.totalorder %s16, 1
      %s751 = scalar_select %p750, %s16, 1
      %s752 = smul.addr %s751, 8
      %s753 = scalar_lea.vmem %s5, %s752
      // Predicated region
      $region41: #{decoder_forward.18} parent=39 // pred_check
        %p754 = pneg %p159
      $region42: #{decoder_forward.18} parent=39 // pred_check_branch
        %756 = sbr.rel (%p754) target = $region44
      $region43: #{decoder_forward.18} parent=39 // pred_region
        _
      $region44: #{decoder_forward.18} parent=39 // pred_fallthru
        _
    $region40: #{decoder_forward.18} parent=5 // pred_fallthru
      _
    %p757 = scmp.le.s32.totalorder 2, %s11
    // Predicated region
    $region45: #{decoder_forward.18} parent=5 // pred_check
      %p758 = pneg %p757
    $region46: #{decoder_forward.18} parent=5 // pred_check_branch
      %760 = sbr.rel (%p758) target = $region48
    $region47: #{decoder_forward.18} parent=5 // pred_region
      %s761 = ssub.s32 %s11, 2
      // Predicated region
      $region49: #{decoder_forward.18} parent=47 // pred_check
        %p762 = pneg %p165
      $region50: #{decoder_forward.18} parent=47 // pred_check_branch
        %764 = sbr.rel (%p762) target = $region52
      $region51: #{decoder_forward.18} parent=47 // pred_region
        %p765 = scmp.lt.s32.totalorder %s17, 1
        %s766 = scalar_select %p765, %s17, 1
        %s767 = smul.addr %s766, 8
        %s768 = scalar_lea.vmem %s5, %s767
      $region52: #{decoder_forward.18} parent=47 // pred_fallthru
        _
    $region48: #{decoder_forward.18} parent=5 // pred_fallthru
      _
  $region6: #{decoder_forward.18} parent=0 // loop_footer
    %s15 = sadd.s32 1, %s11
  $region7: #{decoder_forward.18} parent=0 // loop_footer_branch
    %10 = sbr.rel target = $region3
  $region8: #{decoder_forward.18} parent=0 // loop_exit
    _

// kernel: decoder_forward.21
$region0: #{decoder_forward.21}
  #allocation0 [shape = 'u32[]', space=smem, size = 0x4, offset = 0x4, fixed_abs, tag = 'smem constant byte address 0x4 - core index']
  #allocation1 [shape = 'u32[144,128]{1,0:T(1,128)}', space=vmem, size = 0x12000, scoped, tag = 'internal scratch']
  #allocation2 [shape = 'f32[16,64]{1,0:T(8,128)}', space=vmem, size = 0x2000, scoped, tag = 'scratch operand']
  %s0 = inlined_call_operand.vmem [shape: f32[16,32], index: 0, kind: input, shape index: {}]
  %s1 = inlined_call_operand.vmem [shape: f32[32,64], index: 1, kind: input, shape index: {}]
  %s2 = inlined_call_operand.vmem [shape: f32[1,64], index: 2, kind: input, shape index: {}]
  %s3 = inlined_call_operand.vmem [shape: f32[16,64], index: 3, kind: output, shape index: {}]
  %s4 = sld [smem:[#allocation0]]
  $region30: #{decoder_forward.21} parent=0
    _
  %s6 = ssub.s32 1, %s4
  %s7 = scalar_select 0, %s6, %s4
  // Predicated region
  $region2: #{decoder_forward.21} parent=0 // pred_check
    _
  $region3: #{decoder_forward.21} parent=0 // pred_check_branch
    %9 = sbr.rel (0) target = $region5
  $region4: #{decoder_forward.21} parent=0 // pred_region
    _
  $region5: #{decoder_forward.21} parent=0 // pred_fallthru
    _
  // Predicated region
  $region6: #{decoder_forward.21} parent=0 // pred_check
    _
  $region7: #{decoder_forward.21} parent=0 // pred_check_branch
    %11 = sbr.rel (0) target = $region9
  $region8: #{decoder_forward.21} parent=0 // pred_region
    _
  $region9: #{decoder_forward.21} parent=0 // pred_fallthru
    _
  // Predicated region
  $region10: #{decoder_forward.21} parent=0 // pred_check
    _
  $region11: #{decoder_forward.21} parent=0 // pred_check_branch
    %13 = sbr.rel (0) target = $region13
  $region12: #{decoder_forward.21} parent=0 // pred_region
    _
  $region13: #{decoder_forward.21} parent=0 // pred_fallthru
    _
  %p15 = scmp.eq.s32.totalorder 0, 0
  // Predicated region
  $region14: #{decoder_forward.21} parent=0 // pred_check
    %p16 = pneg %p15
  $region15: #{decoder_forward.21} parent=0 // pred_check_branch
    %18 = sbr.rel (%p16) target = $region17
  $region16: #{decoder_forward.21} parent=0 // pred_region
    %vm19 = vcmask 523264
    %20 = vst.msk [vmem:[#allocation2] sm:$0xff] %vm19, 0.0
    %21 = vst.msk [vmem:[#allocation2 + $0x8] sm:$0xff] %vm19, 0.0
  $region17: #{decoder_forward.21} parent=0 // pred_fallthru
    _
  %v22 = vld [vmem:[#allocation2] sm:$0xff]
  %v23 = vld [vmem:[#allocation2 + $0x8] sm:$0xff]
  %v24 = vld [vmem:[%s0] sm:$0xff]
  %v25 = vld [vmem:[%s0 + $0x8] sm:$0xff]
  %v26 = vpack.c.bf16 %v25, %v24
  %v27 = vld [vmem:[%s1] sm:$0xff]
  %v28 = vld [vmem:[%s1 + $0x8] sm:$0xff]
  %v29 = vld [vmem:[%s1 + $0x10] sm:$0xff]
  %v30 = vld [vmem:[%s1 + $0x18] sm:$0xff]
  %v31 = vpack.c.bf16 %v28, %v27
  %v32 = vpack.c.bf16 %v30, %v29
  %vm33 = vcmask 261120
  %v35 = vsel %vm33, %v26, 0
  %37 = vmatprep.subr.bf16.mxu0 0
  %38 = vmatpush1.bf16.msra.mxu0 %v31
  %39 = vmatprep.subr.bf16.mxu0 0
  %40 = vmatpush1.bf16.msra.mxu0 %v32
  %41 = vmatprep.subr.bf16.mxu0 0
  %42 = vmatpush1.bf16.msra.mxu0 0
  %43 = vmatprep.subr.bf16.mxu0 0
  %44 = vmatpush1.bf16.msra.mxu0 0
  %45 = vmatprep.subr.bf16.mxu0 0
  %46 = vmatpush1.bf16.msra.mxu0 0
  %47 = vmatprep.subr.bf16.mxu0 0
  %48 = vmatpush1.bf16.msra.mxu0 0
  %49 = vmatprep.subr.bf16.mxu0 0
  %50 = vmatpush1.bf16.msra.mxu0 0
  %51 = vmatprep.subr.bf16.mxu0 0
  %52 = vmatpush1.bf16.msra.mxu0 0
  %53 = vmatprep.subr.bf16.mxu0 0
  %54 = vmatpush1.bf16.msra.mxu0 0
  %55 = vmatprep.subr.bf16.mxu0 0
  %56 = vmatpush1.bf16.msra.mxu0 0
  %57 = vmatprep.subr.bf16.mxu0 0
  %58 = vmatpush1.bf16.msra.mxu0 0
  %59 = vmatprep.subr.bf16.mxu0 0
  %60 = vmatpush1.bf16.msra.mxu0 0
  %61 = vmatprep.subr.bf16.mxu0 0
  %62 = vmatpush1.bf16.msra.mxu0 0
  %63 = vmatprep.subr.bf16.mxu0 0
  %64 = vmatpush1.bf16.msra.mxu0 0
  %65 = vmatprep.subr.bf16.mxu0 0
  %66 = vmatpush1.bf16.msra.mxu0 0
  %67 = vmatprep.subr.bf16.mxu0 0
  %68 = vmatpush1.bf16.msra.mxu0 0
  %69 = vmatprep.mubr.bf16.mxu0 0
  %70 = vmatmul.mubr.bf16.gmra.mrb[0].mxu0 %v35
  %v71 = vpop.f32.mrb[0].mxu0
  %v72 = vadd.f32 0.0, %v71
  %v73 = vpop.f32.mrb[0].mxu0
  %v74 = vpop.f32.mrb[0].mxu0
  %v75 = vadd.f32 0.0, %v74
  %v76 = vpop.f32.mrb[0].mxu0
  %77 = vdwg.mxu0
  %v78 = vadd.f32 %v22, %v72
  %v79 = vadd.f32 %v23, %v75
  %vm80 = vcmask 523264
  %81 = vst.msk [vmem:[#allocation2] sm:$0xff] %vm80, %v78
  %82 = vst.msk [vmem:[#allocation2 + $0x8] sm:$0xff] %vm80, %v79
  // Predicated region
  $region18: #{decoder_forward.21} parent=0 // pred_check
    %p83 = pneg %p15
  $region19: #{decoder_forward.21} parent=0 // pred_check_branch
    %85 = sbr.rel (%p83) target = $region21
  $region20: #{decoder_forward.21} parent=0 // pred_region
    %v86 = vld [vmem:[#allocation2] sm:$0xff]
    %v87 = vld [vmem:[#allocation2 + $0x8] sm:$0xff]
    %v88 = vld [vmem:[%s2] sm:$0x1]
    %v90 = vlaneseq
    %v91 = vshrl.u32 %v90, 7
    %v92 = vsub.s32 0, %v91
    %v93 = vrot.slane %v88, %v92
    %v95 = vadd.f32 %v86, %v93
    %v96 = vadd.f32 %v87, %v93
    %97 = vst.msk [vmem:[%s3] sm:$0xff] %vm80, %v95
    %98 = vst.msk [vmem:[%s3 + $0x8] sm:$0xff] %vm80, %v96
  $region21: #{decoder_forward.21} parent=0 // pred_fallthru
    _
  // Predicated region
  $region22: #{decoder_forward.21} parent=0 // pred_check
    _
  $region23: #{decoder_forward.21} parent=0 // pred_check_branch
    %100 = sbr.rel (0) target = $region25
  $region24: #{decoder_forward.21} parent=0 // pred_region
    _
  $region25: #{decoder_forward.21} parent=0 // pred_fallthru
    _
  // Predicated region
  $region26: #{decoder_forward.21} parent=0 // pred_check
    _
  $region27: #{decoder_forward.21} parent=0 // pred_check_branch
    %102 = sbr.rel (0) target = $region29
  $region28: #{decoder_forward.21} parent=0 // pred_region
    _
  $region29: #{decoder_forward.21} parent=0 // pred_fallthru
    _

// kernel: decoder_forward.33
$region0: #{decoder_forward.33}
  #allocation0 [shape = 'u32[]', space=smem, size = 0x4, offset = 0x4, fixed_abs, tag = 'smem constant byte address 0x4 - core index']
  #allocation1 [shape = 'u32[144,128]{1,0:T(1,128)}', space=vmem, size = 0x12000, scoped, tag = 'internal scratch']
  #allocation2 [shape = 'f32[16,16]{1,0:T(8,128)}', space=vmem, size = 0x2000, scoped, tag = 'scratch operand']
  %s0 = inlined_call_operand.vmem [shape: f32[16,32], index: 0, kind: input, shape index: {}]
  %s1 = inlined_call_operand.vmem [shape: f32[32,16], index: 1, kind: input, shape index: {}]
  %s2 = inlined_call_operand.vmem [shape: f32[1,16], index: 2, kind: input, shape index: {}]
  %s3 = inlined_call_operand.hbm [shape: f32[16,16], index: 3, kind: output, shape index: {}]
  %s4 = sld [smem:[#allocation0]]
  $region30: #{decoder_forward.33} parent=0
    _
  %s6 = ssub.s32 1, %s4
  %s7 = scalar_select 0, %s6, %s4
  $region1: #{decoder_forward.33} parent=0
    #allocation3 [shape = 'u8[8192]{0}', space=vmem, size = 0x2000, scoped, tag = 'output window, operand 0, single buffered']
    #allocation4 [shape = 's32[1]{0}', space=sflag, size = 0x4, scoped, tag = 'scoped memory for decoder_forward.33']
    %8 = vsyncpa [#allocation4], 0
    // Predicated region
    $region2: #{decoder_forward.33} parent=1 // pred_check
      _
    $region3: #{decoder_forward.33} parent=1 // pred_check_branch
      %10 = sbr.rel (0) target = $region5
    $region4: #{decoder_forward.33} parent=1 // pred_region
      _
    $region5: #{decoder_forward.33} parent=1 // pred_fallthru
      _
    // Predicated region
    $region6: #{decoder_forward.33} parent=1 // pred_check
      _
    $region7: #{decoder_forward.33} parent=1 // pred_check_branch
      %12 = sbr.rel (0) target = $region9
    $region8: #{decoder_forward.33} parent=1 // pred_region
      _
    $region9: #{decoder_forward.33} parent=1 // pred_fallthru
      _
    // Predicated region
    $region10: #{decoder_forward.33} parent=1 // pred_check
      _
    $region11: #{decoder_forward.33} parent=1 // pred_check_branch
      %14 = sbr.rel (0) target = $region13
    $region12: #{decoder_forward.33} parent=1 // pred_region
      _
    $region13: #{decoder_forward.33} parent=1 // pred_fallthru
      _
    %p16 = scmp.eq.s32.totalorder 0, 0
    // Predicated region
    $region14: #{decoder_forward.33} parent=1 // pred_check
      %p17 = pneg %p16
    $region15: #{decoder_forward.33} parent=1 // pred_check_branch
      %19 = sbr.rel (%p17) target = $region17
    $region16: #{decoder_forward.33} parent=1 // pred_region
      %vm20 = vcmask 130048
      %21 = vst.msk [vmem:[#allocation2] sm:$0xff] %vm20, 0.0
      %22 = vst.msk [vmem:[#allocation2 + $0x8] sm:$0xff] %vm20, 0.0
    $region17: #{decoder_forward.33} parent=1 // pred_fallthru
      _
    %v23 = vld [vmem:[#allocation2] sm:$0xff]
    %v24 = vld [vmem:[#allocation2 + $0x8] sm:$0xff]
    %v25 = vld [vmem:[%s0] sm:$0xff]
    %v26 = vld [vmem:[%s0 + $0x8] sm:$0xff]
    %v27 = vpack.c.bf16 %v26, %v25
    %v28 = vld [vmem:[%s1] sm:$0xff]
    %v29 = vld [vmem:[%s1 + $0x8] sm:$0xff]
    %v30 = vld [vmem:[%s1 + $0x10] sm:$0xff]
    %v31 = vld [vmem:[%s1 + $0x18] sm:$0xff]
    %v32 = vpack.c.bf16 %v29, %v28
    %v33 = vpack.c.bf16 %v31, %v30
    %vm34 = vcmask 261120
    %v36 = vsel %vm34, %v27, 0
    %38 = vmatprep.subr.bf16.mxu0 0
    %39 = vmatpush1.bf16.msra.mxu0 %v32
    %40 = vmatprep.subr.bf16.mxu0 0
    %41 = vmatpush1.bf16.msra.mxu0 %v33
    %42 = vmatprep.subr.bf16.mxu0 0
    %43 = vmatpush1.bf16.msra.mxu0 0
    %44 = vmatprep.subr.bf16.mxu0 0
    %45 = vmatpush1.bf16.msra.mxu0 0
    %46 = vmatprep.subr.bf16.mxu0 0
    %47 = vmatpush1.bf16.msra.mxu0 0
    %48 = vmatprep.subr.bf16.mxu0 0
    %49 = vmatpush1.bf16.msra.mxu0 0
    %50 = vmatprep.subr.bf16.mxu0 0
    %51 = vmatpush1.bf16.msra.mxu0 0
    %52 = vmatprep.subr.bf16.mxu0 0
    %53 = vmatpush1.bf16.msra.mxu0 0
    %54 = vmatprep.subr.bf16.mxu0 0
    %55 = vmatpush1.bf16.msra.mxu0 0
    %56 = vmatprep.subr.bf16.mxu0 0
    %57 = vmatpush1.bf16.msra.mxu0 0
    %58 = vmatprep.subr.bf16.mxu0 0
    %59 = vmatpush1.bf16.msra.mxu0 0
    %60 = vmatprep.subr.bf16.mxu0 0
    %61 = vmatpush1.bf16.msra.mxu0 0
    %62 = vmatprep.subr.bf16.mxu0 0
    %63 = vmatpush1.bf16.msra.mxu0 0
    %64 = vmatprep.subr.bf16.mxu0 0
    %65 = vmatpush1.bf16.msra.mxu0 0
    %66 = vmatprep.subr.bf16.mxu0 0
    %67 = vmatpush1.bf16.msra.mxu0 0
    %68 = vmatprep.subr.bf16.mxu0 0
    %69 = vmatpush1.bf16.msra.mxu0 0
    %70 = vmatprep.mubr.bf16.mxu0 0
    %71 = vmatmul.mubr.bf16.gmra.mrb[0].mxu0 %v36
    %v72 = vpop.f32.mrb[0].mxu0
    %v73 = vadd.f32 0.0, %v72
    %v74 = vpop.f32.mrb[0].mxu0
    %v75 = vpop.f32.mrb[0].mxu0
    %v76 = vadd.f32 0.0, %v75
    %v77 = vpop.f32.mrb[0].mxu0
    %78 = vdwg.mxu0
    %v79 = vadd.f32 %v23, %v73
    %v80 = vadd.f32 %v24, %v76
    %vm81 = vcmask 130048
    %82 = vst.msk [vmem:[#allocation2] sm:$0xff] %vm81, %v79
    %83 = vst.msk [vmem:[#allocation2 + $0x8] sm:$0xff] %vm81, %v80
    // Predicated region
    $region18: #{decoder_forward.33} parent=1 // pred_check
      %p84 = pneg %p16
    $region19: #{decoder_forward.33} parent=1 // pred_check_branch
      %86 = sbr.rel (%p84) target = $region21
    $region20: #{decoder_forward.33} parent=1 // pred_region
      %v87 = vld [vmem:[#allocation2] sm:$0xff]
      %v88 = vld [vmem:[#allocation2 + $0x8] sm:$0xff]
      %v89 = vld [vmem:[%s2] sm:$0x1]
      %v91 = vlaneseq
      %v92 = vshrl.u32 %v91, 7
      %v93 = vsub.s32 0, %v92
      %v94 = vrot.slane %v89, %v93
      %v96 = vadd.f32 %v87, %v94
      %v97 = vadd.f32 %v88, %v94
      %98 = vst.msk [vmem:[#allocation3] sm:$0xff] %vm81, %v96
      %99 = vst.msk [vmem:[#allocation3 + $0x8] sm:$0xff] %vm81, %v97
    $region21: #{decoder_forward.33} parent=1 // pred_fallthru
      _
    // Predicated region
    $region22: #{decoder_forward.33} parent=1 // pred_check
      _
    $region23: #{decoder_forward.33} parent=1 // pred_check_branch
      %101 = sbr.rel (0) target = $region25
    $region24: #{decoder_forward.33} parent=1 // pred_region
      %s103 = ssub.s32 256, 256
      %104 = vsyncadd [#allocation4], %s103
      %s105 = sshll.u32 [#allocation3], 4
      %s106 = int_to_ptr.vmem [resolvable:$true] %s105
      %111 = dma.vmem_to_hbm [thread:$0]  %s106, 256, %s3, [#allocation4], 128, 128, 8
    $region25: #{decoder_forward.33} parent=1 // pred_fallthru
      _
    // Predicated region
    $region26: #{decoder_forward.33} parent=1 // pred_check
      _
    $region27: #{decoder_forward.33} parent=1 // pred_check_branch
      %113 = sbr.rel (0) target = $region29
    $region28: #{decoder_forward.33} parent=1 // pred_region
      %114 = dma.done [#allocation4], 256
    $region29: #{decoder_forward.33} parent=1 // pred_fallthru
      _
    %115 = vsyncpa [#allocation4], 1

// kernel: decoder_forward.24
$region0: #{decoder_forward.24}
  #allocation0 [shape = 'u32[]', space=smem, size = 0x4, offset = 0x4, fixed_abs, tag = 'smem constant byte address 0x4 - core index']
  #allocation1 [shape = 'u32[144,128]{1,0:T(1,128)}', space=vmem, size = 0x12000, scoped, tag = 'internal scratch']
  %s0 = inlined_call_operand.vmem [shape: f32[16,32], index: 0, kind: input, shape index: {}]
  %s1 = inlined_call_operand.vmem [shape: f32[32,64], index: 1, kind: input, shape index: {}]
  %s2 = inlined_call_operand.vmem [shape: f32[1,64], index: 2, kind: input, shape index: {}]
  %s3 = inlined_call_operand.vmem [shape: f32[64,32], index: 3, kind: input, shape index: {}]
  %s4 = inlined_call_operand.vmem [shape: f32[1,32], index: 4, kind: input, shape index: {}]
  %s5 = inlined_call_operand.vmem [shape: f32[1,32], index: 5, kind: input, shape index: {}]
  %s6 = inlined_call_operand.vmem [shape: f32[1,32], index: 6, kind: input, shape index: {}]
  %s7 = inlined_call_operand.vmem [shape: f32[16,32], index: 7, kind: output, shape index: {}]
  %s8 = sld [smem:[#allocation0]]
  $region38: #{decoder_forward.24} parent=0
    _
  %s10 = ssub.s32 1, %s8
  %s11 = scalar_select 0, %s10, %s8
  // Predicated region
  $region2: #{decoder_forward.24} parent=0 // pred_check
    _
  $region3: #{decoder_forward.24} parent=0 // pred_check_branch
    %13 = sbr.rel (0) target = $region5
  $region4: #{decoder_forward.24} parent=0 // pred_region
    _
  $region5: #{decoder_forward.24} parent=0 // pred_fallthru
    _
  // Predicated region
  $region6: #{decoder_forward.24} parent=0 // pred_check
    _
  $region7: #{decoder_forward.24} parent=0 // pred_check_branch
    %15 = sbr.rel (0) target = $region9
  $region8: #{decoder_forward.24} parent=0 // pred_region
    _
  $region9: #{decoder_forward.24} parent=0 // pred_fallthru
    _
  // Predicated region
  $region10: #{decoder_forward.24} parent=0 // pred_check
    _
  $region11: #{decoder_forward.24} parent=0 // pred_check_branch
    %17 = sbr.rel (0) target = $region13
  $region12: #{decoder_forward.24} parent=0 // pred_region
    _
  $region13: #{decoder_forward.24} parent=0 // pred_fallthru
    _
  // Predicated region
  $region14: #{decoder_forward.24} parent=0 // pred_check
    _
  $region15: #{decoder_forward.24} parent=0 // pred_check_branch
    %19 = sbr.rel (0) target = $region17
  $region16: #{decoder_forward.24} parent=0 // pred_region
    _
  $region17: #{decoder_forward.24} parent=0 // pred_fallthru
    _
  // Predicated region
  $region18: #{decoder_forward.24} parent=0 // pred_check
    _
  $region19: #{decoder_forward.24} parent=0 // pred_check_branch
    %21 = sbr.rel (0) target = $region21
  $region20: #{decoder_forward.24} parent=0 // pred_region
    _
  $region21: #{decoder_forward.24} parent=0 // pred_fallthru
    _
  // Predicated region
  $region22: #{decoder_forward.24} parent=0 // pred_check
    _
  $region23: #{decoder_forward.24} parent=0 // pred_check_branch
    %23 = sbr.rel (0) target = $region25
  $region24: #{decoder_forward.24} parent=0 // pred_region
    _
  $region25: #{decoder_forward.24} parent=0 // pred_fallthru
    _
  // Predicated region
  $region26: #{decoder_forward.24} parent=0 // pred_check
    _
  $region27: #{decoder_forward.24} parent=0 // pred_check_branch
    %25 = sbr.rel (0) target = $region29
  $region28: #{decoder_forward.24} parent=0 // pred_region
    _
  $region29: #{decoder_forward.24} parent=0 // pred_fallthru
    _
  %v27 = vld [vmem:[%s0] sm:$0xff]
  %v28 = vld [vmem:[%s0 + $0x8] sm:$0xff]
  %v29 = vpack.c.bf16 %v28, %v27
  %v30 = vld [vmem:[%s1] sm:$0xff]
  %v31 = vld [vmem:[%s1 + $0x8] sm:$0xff]
  %v32 = vld [vmem:[%s1 + $0x10] sm:$0xff]
  %v33 = vld [vmem:[%s1 + $0x18] sm:$0xff]
  %v34 = vpack.c.bf16 %v31, %v30
  %v35 = vpack.c.bf16 %v33, %v32
  %v36 = vld [vmem:[%s2] sm:$0x1]
  %v38 = vlaneseq
  %v39 = vshrl.u32 %v38, 7
  %v40 = vsub.s32 0, %v39
  %v41 = vrot.slane %v36, %v40
  %vm43 = vcmask 261120
  %v45 = vsel %vm43, %v29, 0
  %47 = vmatprep.subr.bf16.mxu0 0
  %48 = vmatpush1.bf16.msra.mxu0 %v34
  %49 = vmatprep.subr.bf16.mxu0 0
  %50 = vmatpush1.bf16.msra.mxu0 %v35
  %51 = vmatprep.subr.bf16.mxu0 0
  %52 = vmatpush1.bf16.msra.mxu0 0
  %53 = vmatprep.subr.bf16.mxu0 0
  %54 = vmatpush1.bf16.msra.mxu0 0
  %55 = vmatprep.subr.bf16.mxu0 0
  %56 = vmatpush1.bf16.msra.mxu0 0
  %57 = vmatprep.subr.bf16.mxu0 0
  %58 = vmatpush1.bf16.msra.mxu0 0
  %59 = vmatprep.subr.bf16.mxu0 0
  %60 = vmatpush1.bf16.msra.mxu0 0
  %61 = vmatprep.subr.bf16.mxu0 0
  %62 = vmatpush1.bf16.msra.mxu0 0
  %63 = vmatprep.subr.bf16.mxu0 0
  %64 = vmatpush1.bf16.msra.mxu0 0
  %65 = vmatprep.subr.bf16.mxu0 0
  %66 = vmatpush1.bf16.msra.mxu0 0
  %67 = vmatprep.subr.bf16.mxu0 0
  %68 = vmatpush1.bf16.msra.mxu0 0
  %69 = vmatprep.subr.bf16.mxu0 0
  %70 = vmatpush1.bf16.msra.mxu0 0
  %71 = vmatprep.subr.bf16.mxu0 0
  %72 = vmatpush1.bf16.msra.mxu0 0
  %73 = vmatprep.subr.bf16.mxu0 0
  %74 = vmatpush1.bf16.msra.mxu0 0
  %75 = vmatprep.subr.bf16.mxu0 0
  %76 = vmatpush1.bf16.msra.mxu0 0
  %77 = vmatprep.subr.bf16.mxu0 0
  %78 = vmatpush1.bf16.msra.mxu0 0
  %79 = vmatprep.mubr.bf16.mxu0 0
  %80 = vmatmul.mubr.bf16.gmra.mrb[0].mxu0 %v45
  %v81 = vpop.f32.mrb[0].mxu0
  %v82 = vadd.f32 %v41, %v81
  %v83 = vpop.f32.mrb[0].mxu0
  %v84 = vpop.f32.mrb[0].mxu0
  %v85 = vadd.f32 %v41, %v84
  %v86 = vpop.f32.mrb[0].mxu0
  %87 = vdwg.mxu0
  %v88 = vmax.f32 %v82, 0.0
  %v89 = vmax.f32 %v85, 0.0
  %v90 = vpack.c.bf16 %v89, %v88
  %v91 = vld [vmem:[%s3] sm:$0xff]
  %v92 = vld [vmem:[%s3 + $0x8] sm:$0xff]
  %v93 = vld [vmem:[%s3 + $0x10] sm:$0xff]
  %v94 = vld [vmem:[%s3 + $0x18] sm:$0xff]
  %v95 = vld [vmem:[%s3 + $0x20] sm:$0xff]
  %v96 = vld [vmem:[%s3 + $0x28] sm:$0xff]
  %v97 = vld [vmem:[%s3 + $0x30] sm:$0xff]
  %v98 = vld [vmem:[%s3 + $0x38] sm:$0xff]
  %v99 = vpack.c.bf16 %v92, %v91
  %v100 = vpack.c.bf16 %v94, %v93
  %v101 = vpack.c.bf16 %v96, %v95
  %v102 = vpack.c.bf16 %v98, %v97
  %v103 = vld [vmem:[%s4] sm:$0x1]
  %v105 = vlaneseq
  %v106 = vshrl.u32 %v105, 7
  %v107 = vsub.s32 0, %v106
  %v108 = vrot.slane %v103, %v107
  %vm110 = vcmask 523264
  %v112 = vsel %vm110, %v90, 0
  %114 = vmatprep.subr.bf16.mxu0 0
  %115 = vmatpush1.bf16.msra.mxu0 %v99
  %116 = vmatprep.subr.bf16.mxu0 0
  %117 = vmatpush1.bf16.msra.mxu0 %v100
  %118 = vmatprep.subr.bf16.mxu0 0
  %119 = vmatpush1.bf16.msra.mxu0 %v101
  %120 = vmatprep.subr.bf16.mxu0 0
  %121 = vmatpush1.bf16.msra.mxu0 %v102
  %122 = vmatprep.subr.bf16.mxu0 0
  %123 = vmatpush1.bf16.msra.mxu0 0
  %124 = vmatprep.subr.bf16.mxu0 0
  %125 = vmatpush1.bf16.msra.mxu0 0
  %126 = vmatprep.subr.bf16.mxu0 0
  %127 = vmatpush1.bf16.msra.mxu0 0
  %128 = vmatprep.subr.bf16.mxu0 0
  %129 = vmatpush1.bf16.msra.mxu0 0
  %130 = vmatprep.subr.bf16.mxu0 0
  %131 = vmatpush1.bf16.msra.mxu0 0
  %132 = vmatprep.subr.bf16.mxu0 0
  %133 = vmatpush1.bf16.msra.mxu0 0
  %134 = vmatprep.subr.bf16.mxu0 0
  %135 = vmatpush1.bf16.msra.mxu0 0
  %136 = vmatprep.subr.bf16.mxu0 0
  %137 = vmatpush1.bf16.msra.mxu0 0
  %138 = vmatprep.subr.bf16.mxu0 0
  %139 = vmatpush1.bf16.msra.mxu0 0
  %140 = vmatprep.subr.bf16.mxu0 0
  %141 = vmatpush1.bf16.msra.mxu0 0
  %142 = vmatprep.subr.bf16.mxu0 0
  %143 = vmatpush1.bf16.msra.mxu0 0
  %144 = vmatprep.subr.bf16.mxu0 0
  %145 = vmatpush1.bf16.msra.mxu0 0
  %146 = vmatprep.mubr.bf16.mxu0 0
  %147 = vmatmul.mubr.bf16.gmra.mrb[0].mxu0 %v112
  %v148 = vpop.f32.mrb[0].mxu0
  %v149 = vadd.f32 %v108, %v148
  %v150 = vpop.f32.mrb[0].mxu0
  %v151 = vpop.f32.mrb[0].mxu0
  %v152 = vadd.f32 %v108, %v151
  %v153 = vpop.f32.mrb[0].mxu0
  %154 = vdwg.mxu0
  %v155 = vadd.f32 %v27, %v149
  %v156 = vadd.f32 %v28, %v152
  %v157 = vsel %vm43, %v155, 0.0
  %158 = vadd.xlane.f32.xlu0 %v157
  %v159 = vpop.xlane.xlu0 %158
  %v160 = vsel %vm43, %v156, 0.0
  %161 = vadd.xlane.f32.xlu0 %v160
  %v162 = vpop.xlane.xlu0 %161
  %v163 = vrcp.pop 32.0
  %v164 = vmul.f32 %v159, %v163
  %v165 = vmul.f32 %v162, %v163
  %v166 = vsub.f32 %v155, %v164
  %v167 = vsub.f32 %v156, %v165
  %v168 = vmul.f32 %v166, %v166
  %v169 = vmul.f32 %v167, %v167
  %v170 = vsel %vm43, %v168, 0.0
  %171 = vadd.xlane.f32.xlu0 %v170
  %v172 = vpop.xlane.xlu0 %171
  %v173 = vsel %vm43, %v169, 0.0
  %174 = vadd.xlane.f32.xlu0 %v173
  %v175 = vpop.xlane.xlu0 %174
  %v176 = vmul.f32 %v172, %v163
  %v177 = vmul.f32 %v175, %v163
  %v178 = vadd.f32 %v176, 1e-05
  %v179 = vadd.f32 %v177, 1e-05
  %v180 = vrsqrt.pop %v178
  %v181 = vrsqrt.pop %v179
  %v182 = vmul.f32 %v166, %v180
  %v183 = vmul.f32 %v167, %v181
  %v184 = vld [vmem:[%s5] sm:$0x1]
  %v186 = vlaneseq
  %v187 = vshrl.u32 %v186, 7
  %v188 = vsub.s32 0, %v187
  %v189 = vrot.slane %v184, %v188
  %v191 = vmul.f32 %v182, %v189
  %v192 = vmul.f32 %v183, %v189
  %v193 = vld [vmem:[%s6] sm:$0x1]
  %v195 = vlaneseq
  %v196 = vshrl.u32 %v195, 7
  %v197 = vsub.s32 0, %v196
  %v198 = vrot.slane %v193, %v197
  %v200 = vadd.f32 %v191, %v198
  %v201 = vadd.f32 %v192, %v198
  %202 = vst.msk [vmem:[%s7] sm:$0xff] %vm43, %v200
  %203 = vst.msk [vmem:[%s7 + $0x8] sm:$0xff] %vm43, %v201
  // Predicated region
  $region30: #{decoder_forward.24} parent=0 // pred_check
    _
  $region31: #{decoder_forward.24} parent=0 // pred_check_branch
    %205 = sbr.rel (0) target = $region33
  $region32: #{decoder_forward.24} parent=0 // pred_region
    _
  $region33: #{decoder_forward.24} parent=0 // pred_fallthru
    _
  // Predicated region
  $region34: #{decoder_forward.24} parent=0 // pred_check
    _
  $region35: #{decoder_forward.24} parent=0 // pred_check_branch
    %207 = sbr.rel (0) target = $region37
  $region36: #{decoder_forward.24} parent=0 // pred_region
    _
  $region37: #{decoder_forward.24} parent=0 // pred_fallthru
    _

</llo_original>
